<compile_context>
chip_gen: v5e
topology: v5e:2x2
jax: 0.10.0
libtpu: 0.0.40
codegen_flags: <defaults>
</compile_context>

<pallas_src>
import functools

import jax
import jax.numpy as jnp
from jax.experimental import pallas as pl
from jax.experimental.pallas import tpu as pltpu


def _criterion_kernel(pc_ref, lab_ref, conf_ref, iou_ref, out_ref, acc_ref,
                      *, tiles_total, tiles_per_core, has_phantom):
    c = pl.program_id(0)            # core axis ("parallel")
    i = pl.program_id(1)            # tile axis ("arbitrary" / reduction)

    @pl.when(i == 0)
    def _():
        acc_ref[...] = jnp.zeros_like(acc_ref)

    def _accumulate_tile():
        # natural layouts: anchors on sublanes, classes / label fields on lanes
        pc = pc_ref[...].astype(jnp.float32)            # [TM, C] logits
        lab = lab_ref[...].astype(jnp.float32)          # [TM, L]
        pred_conf = conf_ref[...].astype(jnp.float32)   # [TM, 1] logits
        pred_iou = iou_ref[...].astype(jnp.float32)     # [TM, 1]

        label_conf = lab[:, 0:1]
        label_obj = lab[:, 1:2]
        # NOTE: class ids must stay exactly representable in the input dtype
        # (bf16 is exact only up to 256).
        label_cls = lab[:, 2:3].astype(jnp.int32)
        label_scale = lab[:, -1:]

        # ---- confidence: MSEWithLogitsLoss(reduction='none') ----
        # mse*obj*5 + mse*(1-obj)*1 == mse*(4*obj + 1)
        d = jax.nn.sigmoid(pred_conf) - label_conf
        conf_loss = d * d * (label_obj * 4.0 + 1.0)

        # ---- class: CrossEntropyLoss(reduction='none') over the lane axis ----
        m = jnp.max(pc, axis=1, keepdims=True)
        lse = m + jnp.log(jnp.sum(jnp.exp(pc - m), axis=1, keepdims=True))
        cls_iota = jax.lax.broadcasted_iota(jnp.int32, pc.shape, 1)
        picked = jnp.sum(jnp.where(cls_iota == label_cls, pc, 0.0),
                         axis=1, keepdims=True)
        ce = (lse - picked) * label_obj

        # ---- iou ----
        iou_loss = (1.0 - pred_iou) * label_scale * label_obj

        # reduce this tile to three scalars; accumulate in a single vreg
        conf_s = jnp.sum(conf_loss)
        cls_s = jnp.sum(ce)
        iou_s = jnp.sum(iou_loss)

        lane = jax.lax.broadcasted_iota(jnp.int32, acc_ref.shape, 1)
        contrib = jnp.where(lane == 0, conf_s,
                  jnp.where(lane == 1, cls_s,
                  jnp.where(lane == 2, iou_s, 0.0)))
        acc_ref[...] = acc_ref[...] + contrib

    if has_phantom:
        # odd tile count split over 2 cores: the one duplicated ("phantom")
        # tile DMA is harmless (clamped index map) and skipped here.
        @pl.when(c * tiles_per_core + i < tiles_total)
        def _():
            _accumulate_tile()
    else:
        _accumulate_tile()

    @pl.when(i == tiles_per_core - 1)
    def _():
        out_ref[...] = acc_ref[...]


def _loss_sums_ref(pc, lab, conf, iou):
    """Pure-JAX per-anchor loss sums (used for the ragged tail and as reference)."""
    pc = pc.astype(jnp.float32)
    lab = lab.astype(jnp.float32)
    conf = conf.astype(jnp.float32)
    iou = iou.astype(jnp.float32)
    label_conf = lab[:, 0]
    label_obj = lab[:, 1]
    label_cls = lab[:, 2].astype(jnp.int32)
    label_scale = lab[:, -1]

    d = jax.nn.sigmoid(conf[:, 0]) - label_conf
    conf_sum = jnp.sum(d * d * (label_obj * 4.0 + 1.0))

    logp = jax.nn.log_softmax(pc, axis=-1)
    ce = -jnp.take_along_axis(logp, label_cls[:, None], axis=1)[:, 0]
    cls_sum = jnp.sum(ce * label_obj)

    iou_sum = jnp.sum((1.0 - iou[:, 0]) * label_scale * label_obj)
    return jnp.stack([conf_sum, cls_sum, iou_sum])


def _lane_padded_bytes_per_row(cols, dtype):
    """VMEM bytes per anchor for a [tile_m, cols] block (lanes pad to 128)."""
    lanes = ((max(int(cols), 1) + 127) // 128) * 128
    return lanes * jnp.dtype(dtype).itemsize


@functools.partial(jax.jit, static_argnames=("tile_m",))
def criterion_forward(pred_confidence, pred_class, pred_iou, labels,
                      loss_confidence_weight=1.0,
                      loss_class_weight=1.0,
                      loss_iou_weight=1.0,
                      tile_m=None):
    """Equivalent of Criterion()(pred_confidence, pred_class, pred_iou, labels).

    pred_confidence: [B, N, 1]
    pred_class:      [B, N, C]
    pred_iou:        [B, N, 1]
    labels:          [B, N, 8] (cols: confidence, obj, class, x1y1x2y2, weight)
    Returns (loss_confidence, loss_class, loss_iou, total) scalars.
    """
    B, N, C = pred_class.shape
    L = labels.shape[-1]
    M = B * N

    # natural layouts; these reshapes are free (contiguous flatten of B,N)
    pc = pred_class.reshape(M, C)
    lab = labels.reshape(M, L)
    conf = pred_confidence.reshape(M, 1)
    iou = pred_iou.reshape(M, 1)

    # --- tile size from the real (lane-padded) VMEM block footprint ----------
    per_anchor = (_lane_padded_bytes_per_row(C, pc.dtype)
                  + _lane_padded_bytes_per_row(L, lab.dtype)
                  + _lane_padded_bytes_per_row(1, conf.dtype)
                  + _lane_padded_bytes_per_row(1, iou.dtype))
    if tile_m is None:
        in_budget = 18 * 1024 * 1024            # double-buffered input blocks
        cap = max(512, (in_budget // (2 * per_anchor)) // 512 * 512)
        cap = int(min(cap, 16384))
        half = (M // 2) // 512 * 512            # try to give both cores a tile
        tile_m = int(max(512, min(cap, half if half >= 512 else cap)))
    assert tile_m % 8 == 0, "tile_m must be a multiple of 8 (sublane granule)"

    tiles = M // tile_m                          # whole tiles handled in-kernel
    bulk = tiles * tile_m

    kernel_sums = jnp.zeros((3,), jnp.float32)
    if tiles >= 1:
        num_cores = 2 if tiles >= 2 else 1       # 2x on multi-TC chips (v7x),
        tiles_per_core = -(-tiles // num_cores)  # harmless serial pass otherwise
        has_phantom = (num_cores * tiles_per_core) != tiles

        def row_idx(c, i):
            t = c * tiles_per_core + i
            if has_phantom:
                t = jnp.minimum(t, tiles - 1)    # phantom tile -> valid (dup) DMA
            return (t, 0)

        kernel = functools.partial(
            _criterion_kernel, tiles_total=tiles,
            tiles_per_core=tiles_per_core, has_phantom=has_phantom)

        # explicit per-call VMEM budget (works for v5e 16MiB / v6e 32MiB /
        # v7x 32MiB default scoped limits)
        vmem_limit = int(2 * per_anchor * tile_m + (8 << 20))

        hbm_bytes = int(
            bulk * (C * jnp.dtype(pc.dtype).itemsize
                    + L * jnp.dtype(lab.dtype).itemsize
                    + jnp.dtype(conf.dtype).itemsize
                    + jnp.dtype(iou.dtype).itemsize)
            + num_cores * 8 * 128 * 4)

        out = pl.pallas_call(
            kernel,
            out_shape=jax.ShapeDtypeStruct((num_cores * 8, 128), jnp.float32),
            grid_spec=pltpu.PrefetchScalarGridSpec(
                num_scalar_prefetch=0,
                grid=(num_cores, tiles_per_core),
                in_specs=[
                    pl.BlockSpec((tile_m, C), row_idx),
                    pl.BlockSpec((tile_m, L), row_idx),
                    pl.BlockSpec((tile_m, 1), row_idx),
                    pl.BlockSpec((tile_m, 1), row_idx),
                ],
                out_specs=pl.BlockSpec((8, 128), lambda c, i: (c, 0)),
                scratch_shapes=[pltpu.VMEM((8, 128), jnp.float32)],
            ),
            compiler_params=pltpu.CompilerParams(
                dimension_semantics=("parallel", "arbitrary"),
                vmem_limit_bytes=vmem_limit),
            cost_estimate=pl.CostEstimate(
                flops=int(bulk) * (8 * C + 30),
                transcendentals=int(bulk) * (C + 2),
                bytes_accessed=hbm_bytes),
        )(pc, lab, conf, iou)

        # lane 0/1/2 of sublane 0 of each core's row block carry the partials
        kernel_sums = out.reshape(num_cores, 8, 128)[:, 0, :3].sum(axis=0)

    if bulk < M:
        # ragged remainder (< tile_m anchors): tiny pure-JAX epilogue, avoids
        # any padding pass or out-of-bounds reads in the kernel.
        tail = _loss_sums_ref(pc[bulk:], lab[bulk:], conf[bulk:], iou[bulk:])
        sums = kernel_sums + tail
    else:
        sums = kernel_sums

    # scale_loss == 'batch': divide each summed loss by the batch size
    loss_confidence = sums[0] / B
    loss_class = sums[1] / B
    loss_iou = sums[2] / B
    total = (loss_confidence_weight * loss_confidence
             + loss_class_weight * loss_class
             + loss_iou_weight * loss_iou)
    return loss_confidence, loss_class, loss_iou, total


if __name__ == "__main__":
    def make_inputs(key, B, N, C, dtype=jnp.float32):
        ks = jax.random.split(key, 8)
        pred_confidence = jax.random.normal(ks[0], (B, N, 1), dtype=jnp.float32)
        pred_class = jax.random.normal(ks[1], (B, N, C), dtype=jnp.float32)
        pred_iou = jax.random.uniform(ks[2], (B, N, 1), dtype=jnp.float32)
        label_conf = jax.random.uniform(ks[3], (B, N), dtype=jnp.float32)
        label_obj = (jax.random.uniform(ks[4], (B, N)) > 0.7).astype(jnp.float32)
        label_cls = jax.random.randint(ks[5], (B, N), 0, C).astype(jnp.float32)
        boxes = jax.random.uniform(ks[6], (B, N, 4), dtype=jnp.float32)
        label_scale = jax.random.uniform(ks[7], (B, N), dtype=jnp.float32) + 1.0
        labels = jnp.concatenate(
            [label_conf[..., None], label_obj[..., None], label_cls[..., None],
             boxes, label_scale[..., None]], axis=-1)            # [B, N, 8]
        return (pred_confidence.astype(dtype), pred_class.astype(dtype),
                pred_iou.astype(dtype), labels.astype(dtype))

    def reference(pred_confidence, pred_class, pred_iou, labels):
        B, N, C = pred_class.shape
        M = B * N
        sums = _loss_sums_ref(pred_class.reshape(M, C),
                              labels.reshape(M, -1),
                              pred_confidence.reshape(M, 1),
                              pred_iou.reshape(M, 1))
        lc, lcls, liou = sums[0] / B, sums[1] / B, sums[2] / B
        return lc, lcls, liou, lc + lcls + liou

    # case 1: even tile count, no ragged tail (M=512, tile_m=128 -> 4 tiles)
    args = make_inputs(jax.random.PRNGKey(0), B=2, N=256, C=8)
    got = jax.block_until_ready(criterion_forward(*args, tile_m=128))
    exp = reference(*args)
    for g, e in zip(got, exp):
        assert jnp.allclose(g, e, rtol=1e-4, atol=1e-4), (g, e)

    # case 2: odd tile count + ragged tail (M=666 -> 5 tiles + 26-anchor tail)
    args2 = make_inputs(jax.random.PRNGKey(1), B=2, N=333, C=8)
    got2 = jax.block_until_ready(criterion_forward(*args2, tile_m=128))
    exp2 = reference(*args2)
    for g, e in zip(got2, exp2):
        assert jnp.allclose(g, e, rtol=1e-4, atol=1e-4), (g, e)

    # case 3: bf16 producer (no wrapper-side cast; kernel up-casts in VMEM)
    args3 = make_inputs(jax.random.PRNGKey(2), B=2, N=256, C=8,
                        dtype=jnp.bfloat16)
    got3 = jax.block_until_ready(criterion_forward(*args3, tile_m=128))
    exp3 = reference(*args3)
    for g, e in zip(got3, exp3):
        assert jnp.allclose(g, e, rtol=2e-3, atol=2e-2), (g, e)

    print("KERNEL_OK")
</pallas_src>

<mosaic_0001>
module attributes {stable_mosaic.version = 11 : i64} {
  func.func @_criterion_kernel(%arg0: i32, %arg1: i32, %arg2: memref<128x8xf32, #tpu.memory_space<vmem>>, %arg3: memref<128x8xf32, #tpu.memory_space<vmem>>, %arg4: memref<128x1xf32, #tpu.memory_space<vmem>>, %arg5: memref<128x1xf32, #tpu.memory_space<vmem>>, %arg6: memref<8x128xf32, #tpu.memory_space<vmem>>, %arg7: memref<8x128xf32, #tpu.memory_space<vmem>>) attributes {dimension_semantics = [#tpu.dimension_semantics<parallel>, #tpu.dimension_semantics<arbitrary>], iteration_bounds = array<i64: 2, 2>, scalar_prefetch = 0 : i64, scratch_operands = 1 : i64, tpu.core_type = #tpu.core_type<tc>, window_params = [{transform_indices = @transform_0, window_bounds = array<i64: 128, 8>}, {transform_indices = @transform_1, window_bounds = array<i64: 128, 8>}, {transform_indices = @transform_2, window_bounds = array<i64: 128, 1>}, {transform_indices = @transform_3, window_bounds = array<i64: 128, 1>}, {transform_indices = @transform_4, window_bounds = array<i64: 8, 128>}]} {
    %c0_i32 = arith.constant 0 : i32
    %0 = arith.cmpi eq, %arg1, %c0_i32 : i32
    %1 = arith.extui %0 : i1 to i32
    %c0_i32_0 = arith.constant 0 : i32
    %2 = arith.cmpi ne, %1, %c0_i32_0 : i32
    scf.if %2 {
      %cst_26 = arith.constant 0.000000e+00 : f32
      %78 = vector.broadcast %cst_26 : f32 to vector<8x128xf32>
      %c0_27 = arith.constant 0 : index
      %c0_28 = arith.constant 0 : index
      %79 = vector.load %arg7[%c0_27, %c0_28] : memref<8x128xf32, #tpu.memory_space<vmem>>, vector<8x128xf32>
      tpu.vector_store %arg7[%c0_27, %c0_28], %78 {strides = array<i32>} : memref<8x128xf32, #tpu.memory_space<vmem>>, vector<8x128xf32>,
    } else {
    }
    %c0 = arith.constant 0 : index
    %c0_1 = arith.constant 0 : index
    %3 = vector.load %arg2[%c0, %c0_1] : memref<128x8xf32, #tpu.memory_space<vmem>>, vector<128x8xf32>
    %c0_2 = arith.constant 0 : index
    %c0_3 = arith.constant 0 : index
    %4 = vector.load %arg3[%c0_2, %c0_3] : memref<128x8xf32, #tpu.memory_space<vmem>>, vector<128x8xf32>
    %c0_4 = arith.constant 0 : index
    %c0_5 = arith.constant 0 : index
    %5 = vector.load %arg4[%c0_4, %c0_5] : memref<128x1xf32, #tpu.memory_space<vmem>>, vector<128x1xf32>
    %c0_6 = arith.constant 0 : index
    %c0_7 = arith.constant 0 : index
    %6 = vector.load %arg5[%c0_6, %c0_7] : memref<128x1xf32, #tpu.memory_space<vmem>>, vector<128x1xf32>
    %7 = vector.extract_strided_slice %4 {offsets = [0, 0], sizes = [128, 1], strides = [1, 1]} : vector<128x8xf32> to vector<128x1xf32>
    %8 = vector.extract_strided_slice %4 {offsets = [0, 1], sizes = [128, 1], strides = [1, 1]} : vector<128x8xf32> to vector<128x1xf32>
    %9 = vector.extract_strided_slice %4 {offsets = [0, 2], sizes = [128, 1], strides = [1, 1]} : vector<128x8xf32> to vector<128x1xf32>
    %10 = arith.fptosi %9 : vector<128x1xf32> to vector<128x1xi32>
    %11 = vector.extract_strided_slice %4 {offsets = [0, 7], sizes = [128, 1], strides = [1, 1]} : vector<128x8xf32> to vector<128x1xf32>
    %12 = arith.negf %5 : vector<128x1xf32>
    %13 = math.exp %12 : vector<128x1xf32>
    %cst = arith.constant 1.000000e+00 : f32
    %14 = vector.broadcast %cst : f32 to vector<128x1xf32>
    %15 = arith.addf %14, %13 : vector<128x1xf32>
    %16 = arith.divf %14, %15 : vector<128x1xf32>
    %17 = arith.subf %16, %7 : vector<128x1xf32>
    %18 = arith.mulf %17, %17 : vector<128x1xf32>
    %cst_8 = arith.constant 4.000000e+00 : f32
    %19 = vector.broadcast %cst_8 : f32 to vector<128x1xf32>
    %20 = arith.mulf %8, %19 : vector<128x1xf32>
    %cst_9 = arith.constant 1.000000e+00 : f32
    %21 = vector.broadcast %cst_9 : f32 to vector<128x1xf32>
    %22 = arith.addf %20, %21 : vector<128x1xf32>
    %23 = arith.mulf %18, %22 : vector<128x1xf32>
    %cst_10 = arith.constant dense<0xFF800000> : vector<128xf32>
    %24 = vector.multi_reduction <maximumf>, %3, %cst_10 [1] : vector<128x8xf32> to vector<128xf32>
    %25 = vector.shape_cast %24 : vector<128xf32> to vector<128x1xf32>
    %26 = vector.broadcast %25 : vector<128x1xf32> to vector<128x8xf32>
    %27 = arith.subf %3, %26 : vector<128x8xf32>
    %28 = math.exp %27 : vector<128x8xf32>
    %cst_11 = arith.constant dense<0.000000e+00> : vector<128xf32>
    %29 = vector.multi_reduction <add>, %28, %cst_11 [1] : vector<128x8xf32> to vector<128xf32>
    %30 = vector.shape_cast %29 : vector<128xf32> to vector<128x1xf32>
    %31 = math.log %30 : vector<128x1xf32>
    %32 = arith.addf %25, %31 : vector<128x1xf32>
    %33 = tpu.iota {dimensions = array<i32: 1>} : vector<128x8xi32>
    %34 = vector.broadcast %10 : vector<128x1xi32> to vector<128x8xi32>
    %35 = arith.cmpi eq, %33, %34 : vector<128x8xi32>
    %cst_12 = arith.constant 0.000000e+00 : f32
    %36 = vector.broadcast %cst_12 : f32 to vector<128x8xf32>
    %37 = arith.select %35, %3, %36 : vector<128x8xi1>, vector<128x8xf32>
    %cst_13 = arith.constant dense<0.000000e+00> : vector<128xf32>
    %38 = vector.multi_reduction <add>, %37, %cst_13 [1] : vector<128x8xf32> to vector<128xf32>
    %39 = vector.shape_cast %38 : vector<128xf32> to vector<128x1xf32>
    %40 = arith.subf %32, %39 : vector<128x1xf32>
    %41 = arith.mulf %40, %8 : vector<128x1xf32>
    %cst_14 = arith.constant 1.000000e+00 : f32
    %42 = vector.broadcast %cst_14 : f32 to vector<128x1xf32>
    %43 = arith.subf %42, %6 : vector<128x1xf32>
    %44 = arith.mulf %43, %11 : vector<128x1xf32>
    %45 = arith.mulf %44, %8 : vector<128x1xf32>
    %46 = vector.shape_cast %23 : vector<128x1xf32> to vector<1x128x1xf32>
    %cst_15 = arith.constant dense<0.000000e+00> : vector<1xf32>
    %47 = vector.multi_reduction <add>, %46, %cst_15 [1, 2] : vector<1x128x1xf32> to vector<1xf32>
    %48 = vector.shape_cast %47 : vector<1xf32> to vector<1x1x1xf32>
    %49 = vector.extract %48[0, 0, 0] : f32 from vector<1x1x1xf32>
    %50 = vector.shape_cast %41 : vector<128x1xf32> to vector<1x128x1xf32>
    %cst_16 = arith.constant dense<0.000000e+00> : vector<1xf32>
    %51 = vector.multi_reduction <add>, %50, %cst_16 [1, 2] : vector<1x128x1xf32> to vector<1xf32>
    %52 = vector.shape_cast %51 : vector<1xf32> to vector<1x1x1xf32>
    %53 = vector.extract %52[0, 0, 0] : f32 from vector<1x1x1xf32>
    %54 = vector.shape_cast %45 : vector<128x1xf32> to vector<1x128x1xf32>
    %cst_17 = arith.constant dense<0.000000e+00> : vector<1xf32>
    %55 = vector.multi_reduction <add>, %54, %cst_17 [1, 2] : vector<1x128x1xf32> to vector<1xf32>
    %56 = vector.shape_cast %55 : vector<1xf32> to vector<1x1x1xf32>
    %57 = vector.extract %56[0, 0, 0] : f32 from vector<1x1x1xf32>
    %58 = tpu.iota {dimensions = array<i32: 1>} : vector<8x128xi32>
    %c0_i32_18 = arith.constant 0 : i32
    %59 = vector.broadcast %c0_i32_18 : i32 to vector<8x128xi32>
    %60 = arith.cmpi eq, %58, %59 : vector<8x128xi32>
    %c1_i32 = arith.constant 1 : i32
    %61 = vector.broadcast %c1_i32 : i32 to vector<8x128xi32>
    %62 = arith.cmpi eq, %58, %61 : vector<8x128xi32>
    %c2_i32 = arith.constant 2 : i32
    %63 = vector.broadcast %c2_i32 : i32 to vector<8x128xi32>
    %64 = arith.cmpi eq, %58, %63 : vector<8x128xi32>
    %cst_19 = arith.constant 0.000000e+00 : f32
    %65 = vector.broadcast %57 : f32 to vector<8x128xf32>
    %66 = vector.broadcast %cst_19 : f32 to vector<8x128xf32>
    %67 = arith.select %64, %65, %66 : vector<8x128xi1>, vector<8x128xf32>
    %68 = vector.broadcast %53 : f32 to vector<8x128xf32>
    %69 = arith.select %62, %68, %67 : vector<8x128xi1>, vector<8x128xf32>
    %70 = vector.broadcast %49 : f32 to vector<8x128xf32>
    %71 = arith.select %60, %70, %69 : vector<8x128xi1>, vector<8x128xf32>
    %c0_20 = arith.constant 0 : index
    %c0_21 = arith.constant 0 : index
    %72 = vector.load %arg7[%c0_20, %c0_21] : memref<8x128xf32, #tpu.memory_space<vmem>>, vector<8x128xf32>
    %73 = arith.addf %72, %71 : vector<8x128xf32>
    %c0_22 = arith.constant 0 : index
    %c0_23 = arith.constant 0 : index
    %74 = vector.load %arg7[%c0_22, %c0_23] : memref<8x128xf32, #tpu.memory_space<vmem>>, vector<8x128xf32>
    tpu.vector_store %arg7[%c0_22, %c0_23], %73 {strides = array<i32>} : memref<8x128xf32, #tpu.memory_space<vmem>>, vector<8x128xf32>,
    %c1_i32_24 = arith.constant 1 : i32
    %75 = arith.cmpi eq, %arg1, %c1_i32_24 : i32
    %76 = arith.extui %75 : i1 to i32
    %c0_i32_25 = arith.constant 0 : i32
    %77 = arith.cmpi ne, %76, %c0_i32_25 : i32
    scf.if %77 {
      %c0_26 = arith.constant 0 : index
      %c0_27 = arith.constant 0 : index
      %78 = vector.load %arg7[%c0_26, %c0_27] : memref<8x128xf32, #tpu.memory_space<vmem>>, vector<8x128xf32>
      %c0_28 = arith.constant 0 : index
      %c0_29 = arith.constant 0 : index
      %79 = vector.load %arg6[%c0_28, %c0_29] : memref<8x128xf32, #tpu.memory_space<vmem>>, vector<8x128xf32>
      tpu.vector_store %arg6[%c0_28, %c0_29], %78 {strides = array<i32>} : memref<8x128xf32, #tpu.memory_space<vmem>>, vector<8x128xf32>,
    } else {
    }
    return
  }
  func.func @transform_0(%arg0: i32, %arg1: i32) -> (i32, i32) {
    %c2_i32 = arith.constant 2 : i32
    %0 = arith.muli %arg0, %c2_i32 : i32
    %1 = arith.addi %0, %arg1 : i32
    %c0_i32 = arith.constant 0 : i32
    %c0_i32_0 = arith.constant 0 : i32
    return %1, %c0_i32 : i32, i32
  }
  func.func @transform_1(%arg0: i32, %arg1: i32) -> (i32, i32) {
    %c2_i32 = arith.constant 2 : i32
    %0 = arith.muli %arg0, %c2_i32 : i32
    %1 = arith.addi %0, %arg1 : i32
    %c0_i32 = arith.constant 0 : i32
    %c0_i32_0 = arith.constant 0 : i32
    return %1, %c0_i32 : i32, i32
  }
  func.func @transform_2(%arg0: i32, %arg1: i32) -> (i32, i32) {
    %c2_i32 = arith.constant 2 : i32
    %0 = arith.muli %arg0, %c2_i32 : i32
    %1 = arith.addi %0, %arg1 : i32
    %c0_i32 = arith.constant 0 : i32
    %c0_i32_0 = arith.constant 0 : i32
    return %1, %c0_i32 : i32, i32
  }
  func.func @transform_3(%arg0: i32, %arg1: i32) -> (i32, i32) {
    %c2_i32 = arith.constant 2 : i32
    %0 = arith.muli %arg0, %c2_i32 : i32
    %1 = arith.addi %0, %arg1 : i32
    %c0_i32 = arith.constant 0 : i32
    %c0_i32_0 = arith.constant 0 : i32
    return %1, %c0_i32 : i32, i32
  }
  func.func @transform_4(%arg0: i32, %arg1: i32) -> (i32, i32) {
    %c0_i32 = arith.constant 0 : i32
    %c0_i32_0 = arith.constant 0 : i32
    return %arg0, %c0_i32 : i32, i32
  }
}

</mosaic_0001>

<llo_original>
// kernel: criterion_forward.1
$region0: #{criterion_forward.1}
  #allocation0 [shape = 'u32[]', space=smem, size = 0x4, offset = 0x4, fixed_abs, tag = 'smem constant byte address 0x4 - core index']
  #allocation1 [shape = 'u32[72,128]{1,0:T(1,128)}', space=vmem, size = 0x9000, scoped, tag = 'internal scratch']
  #allocation2 [shape = 'f32[8,128]{1,0:T(8,128)}', space=vmem, size = 0x1000, scoped, tag = 'scratch operand']
  %s0 = inlined_call_operand.vmem [shape: f32[512,8], index: 0, kind: input, shape index: {}]
  %s1 = inlined_call_operand.vmem [shape: f32[512,8], index: 1, kind: input, shape index: {}]
  %s2 = inlined_call_operand.vmem [shape: f32[512,1], index: 2, kind: input, shape index: {}]
  %s3 = inlined_call_operand.vmem [shape: f32[512,1], index: 3, kind: input, shape index: {}]
  %s4 = inlined_call_operand.vmem [shape: f32[16,128], index: 4, kind: output, shape index: {}]
  %s5 = sld [smem:[#allocation0]]
  $region57: #{criterion_forward.1} parent=0
    _
  %s7 = ssub.s32 1, %s5
  %s8 = scalar_select 0, %s7, %s5
  loop: start=0, step=1, limit=6
  $region2: #{criterion_forward.1} parent=0 // loop_pre_header
    _
  $region3: #{criterion_forward.1} parent=0 // loop_header
    %s10 = sphi 0, %s14
    %p11 = scmp.ge.s32.totalorder %s10, 6
    %s17 = sphi 0, %s29
    %s18 = sphi 0, %s25
    %s19 = sphi 0, %s17
    %s20 = sphi 0, %s18
    %s21 = sphi 0, %s19
    %s22 = sphi 0, %s20
    %s36 = sphi 0, %s38
    %s39 = sphi 0, %s36
    %s40 = sphi 0, %s39
    %s56 = sphi 0, %s40
    %s66 = sphi 0, %s68
    %s69 = sphi 0, %s66
    %s70 = sphi 0, %s69
    %s86 = sphi 0, %s70
    %s96 = sphi 0, %s98
    %s99 = sphi 0, %s96
    %s100 = sphi 0, %s99
    %s116 = sphi 0, %s100
    %s126 = sphi 0, %s128
    %s129 = sphi 0, %s126
    %s130 = sphi 0, %s129
    %s146 = sphi 0, %s130
    %s152 = sphi 0, %s154
    %s155 = sphi 0, %s152
    %s156 = sphi 0, %s155
    %s172 = sphi 0, %s156
  $region4: #{criterion_forward.1} parent=0 // loop_header_branch
    %13 = sbr.rel (%p11) target = $region8
  $region5: #{criterion_forward.1} parent=0 // loop_body
    %s15 = ssub.s32 %s10, 1
    %s16 = ssub.s32 %s10, 2
    %s23 = sadd.s32 1, %s18
    %p24 = scmp.ge.s32.totalorder %s23, 2
    %s25 = scalar_select %p24, 0, %s23
    %s26 = sadd.s32 1, %s17
    %s27 = scalar_select %p24, %s26, %s17
    %p28 = scmp.ge.s32.totalorder %s27, 2
    %s29 = scalar_select %p28, 0, %s27
    %s30 = smul.u32 %s17, 2
    %s31 = sadd.s32 %s30, %s18
    %s32 = smul.u32 %s29, 2
    %s33 = sadd.s32 %s32, %s25
    %s34 = ssub.s32 %s31, %s33
    %p35 = scmp.eq.s32.totalorder %s34, 0
    %s37 = sadd.s32 %s36, 1
    %s38 = scalar_select %p35, %s36, %s37
    %p41 = pneg %p35
    %p42 = scmp.eq.s32.totalorder %s10, 3
    %p43 = por %p41, %p42
    %p44 = scmp.ne.s32.totalorder %s36, %s39
    %p45 = scmp.eq.s32.totalorder %s10, 0
    %p46 = por %p44, %p45
    %p47 = scmp.ne.s32.totalorder %s36, %s39
    %p48 = scmp.eq.s32.totalorder %s15, 3
    %p49 = por %p47, %p48
    %p50 = scmp.ne.s32.totalorder %s39, %s40
    %p51 = scmp.eq.s32.totalorder %s15, 0
    %p52 = por %p50, %p51
    %p53 = scmp.ne.s32.totalorder %s39, %s40
    %p54 = scmp.eq.s32.totalorder %s16, 3
    %p55 = por %p53, %p54
    %p57 = scmp.ne.s32.totalorder %s40, %s56
    %p58 = scmp.eq.s32.totalorder %s16, 0
    %p59 = por %p57, %p58
    %s60 = smul.u32 %s17, 2
    %s61 = sadd.s32 %s60, %s18
    %s62 = smul.u32 %s29, 2
    %s63 = sadd.s32 %s62, %s25
    %s64 = ssub.s32 %s61, %s63
    %p65 = scmp.eq.s32.totalorder %s64, 0
    %s67 = sadd.s32 %s66, 1
    %s68 = scalar_select %p65, %s66, %s67
    %p71 = pneg %p65
    %p72 = scmp.eq.s32.totalorder %s10, 3
    %p73 = por %p71, %p72
    %p74 = scmp.ne.s32.totalorder %s66, %s69
    %p75 = scmp.eq.s32.totalorder %s10, 0
    %p76 = por %p74, %p75
    %p77 = scmp.ne.s32.totalorder %s66, %s69
    %p78 = scmp.eq.s32.totalorder %s15, 3
    %p79 = por %p77, %p78
    %p80 = scmp.ne.s32.totalorder %s69, %s70
    %p81 = scmp.eq.s32.totalorder %s15, 0
    %p82 = por %p80, %p81
    %p83 = scmp.ne.s32.totalorder %s69, %s70
    %p84 = scmp.eq.s32.totalorder %s16, 3
    %p85 = por %p83, %p84
    %p87 = scmp.ne.s32.totalorder %s70, %s86
    %p88 = scmp.eq.s32.totalorder %s16, 0
    %p89 = por %p87, %p88
    %s90 = smul.u32 %s17, 2
    %s91 = sadd.s32 %s90, %s18
    %s92 = smul.u32 %s29, 2
    %s93 = sadd.s32 %s92, %s25
    %s94 = ssub.s32 %s91, %s93
    %p95 = scmp.eq.s32.totalorder %s94, 0
    %s97 = sadd.s32 %s96, 1
    %s98 = scalar_select %p95, %s96, %s97
    %p101 = pneg %p95
    %p102 = scmp.eq.s32.totalorder %s10, 3
    %p103 = por %p101, %p102
    %p104 = scmp.ne.s32.totalorder %s96, %s99
    %p105 = scmp.eq.s32.totalorder %s10, 0
    %p106 = por %p104, %p105
    %p107 = scmp.ne.s32.totalorder %s96, %s99
    %p108 = scmp.eq.s32.totalorder %s15, 3
    %p109 = por %p107, %p108
    %p110 = scmp.ne.s32.totalorder %s99, %s100
    %p111 = scmp.eq.s32.totalorder %s15, 0
    %p112 = por %p110, %p111
    %p113 = scmp.ne.s32.totalorder %s99, %s100
    %p114 = scmp.eq.s32.totalorder %s16, 3
    %p115 = por %p113, %p114
    %p117 = scmp.ne.s32.totalorder %s100, %s116
    %p118 = scmp.eq.s32.totalorder %s16, 0
    %p119 = por %p117, %p118
    %s120 = smul.u32 %s17, 2
    %s121 = sadd.s32 %s120, %s18
    %s122 = smul.u32 %s29, 2
    %s123 = sadd.s32 %s122, %s25
    %s124 = ssub.s32 %s121, %s123
    %p125 = scmp.eq.s32.totalorder %s124, 0
    %s127 = sadd.s32 %s126, 1
    %s128 = scalar_select %p125, %s126, %s127
    %p131 = pneg %p125
    %p132 = scmp.eq.s32.totalorder %s10, 3
    %p133 = por %p131, %p132
    %p134 = scmp.ne.s32.totalorder %s126, %s129
    %p135 = scmp.eq.s32.totalorder %s10, 0
    %p136 = por %p134, %p135
    %p137 = scmp.ne.s32.totalorder %s126, %s129
    %p138 = scmp.eq.s32.totalorder %s15, 3
    %p139 = por %p137, %p138
    %p140 = scmp.ne.s32.totalorder %s129, %s130
    %p141 = scmp.eq.s32.totalorder %s15, 0
    %p142 = por %p140, %p141
    %p143 = scmp.ne.s32.totalorder %s129, %s130
    %p144 = scmp.eq.s32.totalorder %s16, 3
    %p145 = por %p143, %p144
    %p147 = scmp.ne.s32.totalorder %s130, %s146
    %p148 = scmp.eq.s32.totalorder %s16, 0
    %p149 = por %p147, %p148
    %s150 = ssub.s32 %s17, %s29
    %p151 = scmp.eq.s32.totalorder %s150, 0
    %s153 = sadd.s32 %s152, 1
    %s154 = scalar_select %p151, %s152, %s153
    %p157 = pneg %p151
    %p158 = scmp.eq.s32.totalorder %s10, 3
    %p159 = por %p157, %p158
    %p160 = scmp.ne.s32.totalorder %s152, %s155
    %p161 = scmp.eq.s32.totalorder %s10, 0
    %p162 = por %p160, %p161
    %p163 = scmp.ne.s32.totalorder %s152, %s155
    %p164 = scmp.eq.s32.totalorder %s15, 3
    %p165 = por %p163, %p164
    %p166 = scmp.ne.s32.totalorder %s155, %s156
    %p167 = scmp.eq.s32.totalorder %s15, 0
    %p168 = por %p166, %p167
    %p169 = scmp.ne.s32.totalorder %s155, %s156
    %p170 = scmp.eq.s32.totalorder %s16, 3
    %p171 = por %p169, %p170
    %p173 = scmp.ne.s32.totalorder %s156, %s172
    %p174 = scmp.eq.s32.totalorder %s16, 0
    %p175 = por %p173, %p174
    %p176 = scmp.le.s32.totalorder 1, %s10
    %p177 = scmp.lt.s32.totalorder %s10, 5
    %p178 = pnand %p176, %p177
    %p179 = pneg %p178
    // Predicated region
    $region9: #{criterion_forward.1} parent=5 // pred_check
      _
    $region10: #{criterion_forward.1} parent=5 // pred_check_branch
      %181 = sbr.rel (%p178) target = $region12
    $region11: #{criterion_forward.1} parent=5 // pred_region
      %s182 = ssub.s32 %s10, 1
    $region12: #{criterion_forward.1} parent=5 // pred_fallthru
      _
    %p183 = scmp.lt.s32.totalorder %s10, 4
    // Predicated region
    $region13: #{criterion_forward.1} parent=5 // pred_check
      %p184 = pneg %p183
    $region14: #{criterion_forward.1} parent=5 // pred_check_branch
      %186 = sbr.rel (%p184) target = $region16
    $region15: #{criterion_forward.1} parent=5 // pred_region
      // Predicated region
      $region17: #{criterion_forward.1} parent=15 // pred_check
        %p187 = pneg %p46
      $region18: #{criterion_forward.1} parent=15 // pred_check_branch
        %189 = sbr.rel (%p187) target = $region20
      $region19: #{criterion_forward.1} parent=15 // pred_region
        %s190 = smul.u32 %s17, 2
        %s191 = sadd.s32 %s190, %s18
        %s192 = smul.u32 16, %s191
        %p193 = scmp.lt.s32.totalorder %s192, 63
        %s194 = scalar_select %p193, %s192, 63
        %s195 = smul.addr %s194, 8
        %s196 = scalar_lea.vmem %s0, %s195
        %s197 = smul.u32 %s17, 2
        %s198 = sadd.s32 %s197, %s18
        %s199 = smul.u32 16, %s198
      $region20: #{criterion_forward.1} parent=15 // pred_fallthru
        _
      // Predicated region
      $region21: #{criterion_forward.1} parent=15 // pred_check
        %p200 = pneg %p76
      $region22: #{criterion_forward.1} parent=15 // pred_check_branch
        %202 = sbr.rel (%p200) target = $region24
      $region23: #{criterion_forward.1} parent=15 // pred_region
        %s203 = smul.u32 %s17, 2
        %s204 = sadd.s32 %s203, %s18
        %s205 = smul.u32 16, %s204
        %p206 = scmp.lt.s32.totalorder %s205, 63
        %s207 = scalar_select %p206, %s205, 63
        %s208 = smul.addr %s207, 8
        %s209 = scalar_lea.vmem %s1, %s208
        %s210 = smul.u32 %s17, 2
        %s211 = sadd.s32 %s210, %s18
        %s212 = smul.u32 16, %s211
      $region24: #{criterion_forward.1} parent=15 // pred_fallthru
        _
      // Predicated region
      $region25: #{criterion_forward.1} parent=15 // pred_check
        %p213 = pneg %p106
      $region26: #{criterion_forward.1} parent=15 // pred_check_branch
        %215 = sbr.rel (%p213) target = $region28
      $region27: #{criterion_forward.1} parent=15 // pred_region
        %s216 = smul.u32 %s17, 2
        %s217 = sadd.s32 %s216, %s18
        %s218 = smul.u32 16, %s217
        %p219 = scmp.lt.s32.totalorder %s218, 63
        %s220 = scalar_select %p219, %s218, 63
        %s221 = smul.addr %s220, 8
        %s222 = scalar_lea.vmem %s2, %s221
        %s223 = smul.u32 %s17, 2
        %s224 = sadd.s32 %s223, %s18
        %s225 = smul.u32 16, %s224
      $region28: #{criterion_forward.1} parent=15 // pred_fallthru
        _
      // Predicated region
      $region29: #{criterion_forward.1} parent=15 // pred_check
        %p226 = pneg %p136
      $region30: #{criterion_forward.1} parent=15 // pred_check_branch
        %228 = sbr.rel (%p226) target = $region32
      $region31: #{criterion_forward.1} parent=15 // pred_region
        %s229 = smul.u32 %s17, 2
        %s230 = sadd.s32 %s229, %s18
        %s231 = smul.u32 16, %s230
        %p232 = scmp.lt.s32.totalorder %s231, 63
        %s233 = scalar_select %p232, %s231, 63
        %s234 = smul.addr %s233, 8
        %s235 = scalar_lea.vmem %s3, %s234
        %s236 = smul.u32 %s17, 2
        %s237 = sadd.s32 %s236, %s18
        %s238 = smul.u32 16, %s237
      $region32: #{criterion_forward.1} parent=15 // pred_fallthru
        _
    $region16: #{criterion_forward.1} parent=5 // pred_fallthru
      _
    %p239 = scmp.le.s32.totalorder 1, %s10
    %p240 = scmp.lt.s32.totalorder %s10, 5
    %p241 = pnand %p239, %p240
    %p242 = pneg %p241
    // Predicated region
    $region33: #{criterion_forward.1} parent=5 // pred_check
      _
    $region34: #{criterion_forward.1} parent=5 // pred_check_branch
      %244 = sbr.rel (%p241) target = $region36
    $region35: #{criterion_forward.1} parent=5 // pred_region
      %s245 = ssub.s32 %s10, 1
      %s246 = smul.u32 %s19, 2
      %s247 = sadd.s32 %s246, %s20
      %s248 = smul.u32 16, %s247
      %p249 = scmp.lt.s32.totalorder %s248, 63
      %s250 = scalar_select %p249, %s248, 63
      %s251 = smul.addr %s250, 8
      %s252 = scalar_lea.vmem %s0, %s251
      %p253 = pneg %p52
      %p254 = pneg %p49
      %s255 = smul.u32 %s19, 2
      %s256 = sadd.s32 %s255, %s20
      %s257 = smul.u32 16, %s256
      %p258 = scmp.lt.s32.totalorder %s257, 63
      %s259 = scalar_select %p258, %s257, 63
      %s260 = smul.addr %s259, 8
      %s261 = scalar_lea.vmem %s1, %s260
      %p262 = pneg %p82
      %p263 = pneg %p79
      %s264 = smul.u32 %s19, 2
      %s265 = sadd.s32 %s264, %s20
      %s266 = smul.u32 16, %s265
      %p267 = scmp.lt.s32.totalorder %s266, 63
      %s268 = scalar_select %p267, %s266, 63
      %s269 = smul.addr %s268, 8
      %s270 = scalar_lea.vmem %s2, %s269
      %p271 = pneg %p112
      %p272 = pneg %p109
      %s273 = smul.u32 %s19, 2
      %s274 = sadd.s32 %s273, %s20
      %s275 = smul.u32 16, %s274
      %p276 = scmp.lt.s32.totalorder %s275, 63
      %s277 = scalar_select %p276, %s275, 63
      %s278 = smul.addr %s277, 8
      %s279 = scalar_lea.vmem %s3, %s278
      %p280 = pneg %p142
      %p281 = pneg %p139
      %p282 = pneg %p168
      %p283 = pneg %p165
      %p284 = scmp.lt.s32.totalorder %s19, 1
      %s285 = scalar_select %p284, %s19, 1
      %s286 = smul.addr %s285, 8
      %s287 = scalar_lea.vmem %s4, %s286
      %s288 = smul.u32 %s19, 2
      %s289 = sadd.s32 %s288, %s20
      %s290 = smul.u32 16, %s289
      %p291 = scmp.lt.s32.totalorder %s290, 63
      %s292 = scalar_select %p291, %s290, 63
      %s293 = smul.addr %s292, 8
      %s294 = scalar_lea.vmem %s0, %s293
      %s295 = smul.u32 %s19, 2
      %s296 = sadd.s32 %s295, %s20
      %s297 = smul.u32 16, %s296
      %s298 = smul.u32 %s19, 2
      %s299 = sadd.s32 %s298, %s20
      %s300 = smul.u32 16, %s299
      %p301 = scmp.lt.s32.totalorder %s300, 63
      %s302 = scalar_select %p301, %s300, 63
      %s303 = smul.addr %s302, 8
      %s304 = scalar_lea.vmem %s1, %s303
      %s305 = smul.u32 %s19, 2
      %s306 = sadd.s32 %s305, %s20
      %s307 = smul.u32 16, %s306
      %s308 = smul.u32 %s19, 2
      %s309 = sadd.s32 %s308, %s20
      %s310 = smul.u32 16, %s309
      %p311 = scmp.lt.s32.totalorder %s310, 63
      %s312 = scalar_select %p311, %s310, 63
      %s313 = smul.addr %s312, 8
      %s314 = scalar_lea.vmem %s2, %s313
      %s315 = smul.u32 %s19, 2
      %s316 = sadd.s32 %s315, %s20
      %s317 = smul.u32 16, %s316
      %s318 = smul.u32 %s19, 2
      %s319 = sadd.s32 %s318, %s20
      %s320 = smul.u32 16, %s319
      %p321 = scmp.lt.s32.totalorder %s320, 63
      %s322 = scalar_select %p321, %s320, 63
      %s323 = smul.addr %s322, 8
      %s324 = scalar_lea.vmem %s3, %s323
      %s325 = smul.u32 %s19, 2
      %s326 = sadd.s32 %s325, %s20
      %s327 = smul.u32 16, %s326
      %p328 = scmp.lt.s32.totalorder %s19, 1
      %s329 = scalar_select %p328, %s19, 1
      %s330 = smul.addr %s329, 8
      %s331 = scalar_lea.vmem %s4, %s330
      %p332 = scmp.eq.s32.totalorder %s20, 0
      // Predicated region
      $region37: #{criterion_forward.1} parent=35 // pred_check
        %p333 = pneg %p332
      $region38: #{criterion_forward.1} parent=35 // pred_check_branch
        %335 = sbr.rel (%p333) target = $region40
      $region39: #{criterion_forward.1} parent=35 // pred_region
        %336 = vst [vmem:[#allocation2] sm:$0xff] 0.0
      $region40: #{criterion_forward.1} parent=35 // pred_fallthru
        _
      %v337 = vld [vmem:[%s294] sm:$0xff]
      %v338 = vld [vmem:[%s294 + $0x8] sm:$0xff]
      %v339 = vld [vmem:[%s294 + $0x10] sm:$0xff]
      %v340 = vld [vmem:[%s294 + $0x18] sm:$0xff]
      %v341 = vld [vmem:[%s294 + $0x20] sm:$0xff]
      %v342 = vld [vmem:[%s294 + $0x28] sm:$0xff]
      %v343 = vld [vmem:[%s294 + $0x30] sm:$0xff]
      %v344 = vld [vmem:[%s294 + $0x38] sm:$0xff]
      %v345 = vld [vmem:[%s294 + $0x40] sm:$0xff]
      %v346 = vld [vmem:[%s294 + $0x48] sm:$0xff]
      %v347 = vld [vmem:[%s294 + $0x50] sm:$0xff]
      %v348 = vld [vmem:[%s294 + $0x58] sm:$0xff]
      %v349 = vld [vmem:[%s294 + $0x60] sm:$0xff]
      %v350 = vld [vmem:[%s294 + $0x68] sm:$0xff]
      %v351 = vld [vmem:[%s294 + $0x70] sm:$0xff]
      %v352 = vld [vmem:[%s294 + $0x78] sm:$0xff]
      %v353 = vld [vmem:[%s304] sm:$0xff]
      %v354 = vld [vmem:[%s304 + $0x8] sm:$0xff]
      %v355 = vld [vmem:[%s304 + $0x10] sm:$0xff]
      %v356 = vld [vmem:[%s304 + $0x18] sm:$0xff]
      %v357 = vld [vmem:[%s304 + $0x20] sm:$0xff]
      %v358 = vld [vmem:[%s304 + $0x28] sm:$0xff]
      %v359 = vld [vmem:[%s304 + $0x30] sm:$0xff]
      %v360 = vld [vmem:[%s304 + $0x38] sm:$0xff]
      %v361 = vld [vmem:[%s304 + $0x40] sm:$0xff]
      %v362 = vld [vmem:[%s304 + $0x48] sm:$0xff]
      %v363 = vld [vmem:[%s304 + $0x50] sm:$0xff]
      %v364 = vld [vmem:[%s304 + $0x58] sm:$0xff]
      %v365 = vld [vmem:[%s304 + $0x60] sm:$0xff]
      %v366 = vld [vmem:[%s304 + $0x68] sm:$0xff]
      %v367 = vld [vmem:[%s304 + $0x70] sm:$0xff]
      %v368 = vld [vmem:[%s304 + $0x78] sm:$0xff]
      %v369 = vld [vmem:[%s314] sm:$0xff]
      %v370 = vld [vmem:[%s314 + $0x8] sm:$0xff]
      %v371 = vld [vmem:[%s314 + $0x10] sm:$0xff]
      %v372 = vld [vmem:[%s314 + $0x18] sm:$0xff]
      %v373 = vld [vmem:[%s314 + $0x20] sm:$0xff]
      %v374 = vld [vmem:[%s314 + $0x28] sm:$0xff]
      %v375 = vld [vmem:[%s314 + $0x30] sm:$0xff]
      %v376 = vld [vmem:[%s314 + $0x38] sm:$0xff]
      %v377 = vld [vmem:[%s314 + $0x40] sm:$0xff]
      %v378 = vld [vmem:[%s314 + $0x48] sm:$0xff]
      %v379 = vld [vmem:[%s314 + $0x50] sm:$0xff]
      %v380 = vld [vmem:[%s314 + $0x58] sm:$0xff]
      %v381 = vld [vmem:[%s314 + $0x60] sm:$0xff]
      %v382 = vld [vmem:[%s314 + $0x68] sm:$0xff]
      %v383 = vld [vmem:[%s314 + $0x70] sm:$0xff]
      %v384 = vld [vmem:[%s314 + $0x78] sm:$0xff]
      %v385 = vld [vmem:[%s324] sm:$0xff]
      %v386 = vld [vmem:[%s324 + $0x8] sm:$0xff]
      %v387 = vld [vmem:[%s324 + $0x10] sm:$0xff]
      %v388 = vld [vmem:[%s324 + $0x18] sm:$0xff]
      %v389 = vld [vmem:[%s324 + $0x20] sm:$0xff]
      %v390 = vld [vmem:[%s324 + $0x28] sm:$0xff]
      %v391 = vld [vmem:[%s324 + $0x30] sm:$0xff]
      %v392 = vld [vmem:[%s324 + $0x38] sm:$0xff]
      %v393 = vld [vmem:[%s324 + $0x40] sm:$0xff]
      %v394 = vld [vmem:[%s324 + $0x48] sm:$0xff]
      %v395 = vld [vmem:[%s324 + $0x50] sm:$0xff]
      %v396 = vld [vmem:[%s324 + $0x58] sm:$0xff]
      %v397 = vld [vmem:[%s324 + $0x60] sm:$0xff]
      %v398 = vld [vmem:[%s324 + $0x68] sm:$0xff]
      %v399 = vld [vmem:[%s324 + $0x70] sm:$0xff]
      %v400 = vld [vmem:[%s324 + $0x78] sm:$0xff]
      %v401 = vcvt.f32.s32.to.zero.pseudo %v353
      %v402 = vcvt.f32.s32.to.zero.pseudo %v354
      %v403 = vcvt.f32.s32.to.zero.pseudo %v355
      %v404 = vcvt.f32.s32.to.zero.pseudo %v356
      %v405 = vcvt.f32.s32.to.zero.pseudo %v357
      %v406 = vcvt.f32.s32.to.zero.pseudo %v358
      %v407 = vcvt.f32.s32.to.zero.pseudo %v359
      %v408 = vcvt.f32.s32.to.zero.pseudo %v360
      %v409 = vcvt.f32.s32.to.zero.pseudo %v361
      %v410 = vcvt.f32.s32.to.zero.pseudo %v362
      %v411 = vcvt.f32.s32.to.zero.pseudo %v363
      %v412 = vcvt.f32.s32.to.zero.pseudo %v364
      %v413 = vcvt.f32.s32.to.zero.pseudo %v365
      %v414 = vcvt.f32.s32.to.zero.pseudo %v366
      %v415 = vcvt.f32.s32.to.zero.pseudo %v367
      %v416 = vcvt.f32.s32.to.zero.pseudo %v368
      %v417 = vxor.u32 %v369, 2147483648
      %v418 = vxor.u32 %v370, 2147483648
      %v419 = vxor.u32 %v371, 2147483648
      %v420 = vxor.u32 %v372, 2147483648
      %v421 = vxor.u32 %v373, 2147483648
      %v422 = vxor.u32 %v374, 2147483648
      %v423 = vxor.u32 %v375, 2147483648
      %v424 = vxor.u32 %v376, 2147483648
      %v425 = vxor.u32 %v377, 2147483648
      %v426 = vxor.u32 %v378, 2147483648
      %v427 = vxor.u32 %v379, 2147483648
      %v428 = vxor.u32 %v380, 2147483648
      %v429 = vxor.u32 %v381, 2147483648
      %v430 = vxor.u32 %v382, 2147483648
      %v431 = vxor.u32 %v383, 2147483648
      %v432 = vxor.u32 %v384, 2147483648
      %v433 = vmul.f32 %v417, 1.442695
      %v434 = vpow.pop %v433
      %v435 = vmul.f32 %v418, 1.442695
      %v436 = vpow.pop %v435
      %v437 = vmul.f32 %v419, 1.442695
      %v438 = vpow.pop %v437
      %v439 = vmul.f32 %v420, 1.442695
      %v440 = vpow.pop %v439
      %v441 = vmul.f32 %v421, 1.442695
      %v442 = vpow.pop %v441
      %v443 = vmul.f32 %v422, 1.442695
      %v444 = vpow.pop %v443
      %v445 = vmul.f32 %v423, 1.442695
      %v446 = vpow.pop %v445
      %v447 = vmul.f32 %v424, 1.442695
      %v448 = vpow.pop %v447
      %v449 = vmul.f32 %v425, 1.442695
      %v450 = vpow.pop %v449
      %v451 = vmul.f32 %v426, 1.442695
      %v452 = vpow.pop %v451
      %v453 = vmul.f32 %v427, 1.442695
      %v454 = vpow.pop %v453
      %v455 = vmul.f32 %v428, 1.442695
      %v456 = vpow.pop %v455
      %v457 = vmul.f32 %v429, 1.442695
      %v458 = vpow.pop %v457
      %v459 = vmul.f32 %v430, 1.442695
      %v460 = vpow.pop %v459
      %v461 = vmul.f32 %v431, 1.442695
      %v462 = vpow.pop %v461
      %v463 = vmul.f32 %v432, 1.442695
      %v464 = vpow.pop %v463
      %v465 = vadd.f32 %v434, 1.0
      %v466 = vadd.f32 %v436, 1.0
      %v467 = vadd.f32 %v438, 1.0
      %v468 = vadd.f32 %v440, 1.0
      %v469 = vadd.f32 %v442, 1.0
      %v470 = vadd.f32 %v444, 1.0
      %v471 = vadd.f32 %v446, 1.0
      %v472 = vadd.f32 %v448, 1.0
      %v473 = vadd.f32 %v450, 1.0
      %v474 = vadd.f32 %v452, 1.0
      %v475 = vadd.f32 %v454, 1.0
      %v476 = vadd.f32 %v456, 1.0
      %v477 = vadd.f32 %v458, 1.0
      %v478 = vadd.f32 %v460, 1.0
      %v479 = vadd.f32 %v462, 1.0
      %v480 = vadd.f32 %v464, 1.0
      %v481 = vrcp.pop %v465
      %v482 = vmul.f32 %v465, %v481
      %v483 = vsub.f32 1.0, %v482
      %v484 = vmul.f32 %v481, %v483
      %v485 = vadd.f32 %v481, %v484
      %vm486 = vweird.f32 %v465
      %vm487 = vweird.f32 %v481
      %vm488 = vmor %vm486, %vm487
      %v489 = vsel %vm488, %v481, %v485
      %v490 = vand.u32 2147483647, %v465
      %vm491 = vcmp.eq.f32.partialorder %v490, 8.507059e+37
      %v492 = vand.u32 %v465, 2147483648
      %v493 = vor.u32 1.1754944e-38, %v492
      %v494 = vsel %vm491, %v493, %v489
      %v495 = vmul.f32 1.0, %v494
      %v496 = vrcp.pop %v466
      %v497 = vmul.f32 %v466, %v496
      %v498 = vsub.f32 1.0, %v497
      %v499 = vmul.f32 %v496, %v498
      %v500 = vadd.f32 %v496, %v499
      %vm501 = vweird.f32 %v466
      %vm502 = vweird.f32 %v496
      %vm503 = vmor %vm501, %vm502
      %v504 = vsel %vm503, %v496, %v500
      %v505 = vand.u32 2147483647, %v466
      %vm506 = vcmp.eq.f32.partialorder %v505, 8.507059e+37
      %v507 = vand.u32 %v466, 2147483648
      %v508 = vor.u32 1.1754944e-38, %v507
      %v509 = vsel %vm506, %v508, %v504
      %v510 = vmul.f32 1.0, %v509
      %v511 = vrcp.pop %v467
      %v512 = vmul.f32 %v467, %v511
      %v513 = vsub.f32 1.0, %v512
      %v514 = vmul.f32 %v511, %v513
      %v515 = vadd.f32 %v511, %v514
      %vm516 = vweird.f32 %v467
      %vm517 = vweird.f32 %v511
      %vm518 = vmor %vm516, %vm517
      %v519 = vsel %vm518, %v511, %v515
      %v520 = vand.u32 2147483647, %v467
      %vm521 = vcmp.eq.f32.partialorder %v520, 8.507059e+37
      %v522 = vand.u32 %v467, 2147483648
      %v523 = vor.u32 1.1754944e-38, %v522
      %v524 = vsel %vm521, %v523, %v519
      %v525 = vmul.f32 1.0, %v524
      %v526 = vrcp.pop %v468
      %v527 = vmul.f32 %v468, %v526
      %v528 = vsub.f32 1.0, %v527
      %v529 = vmul.f32 %v526, %v528
      %v530 = vadd.f32 %v526, %v529
      %vm531 = vweird.f32 %v468
      %vm532 = vweird.f32 %v526
      %vm533 = vmor %vm531, %vm532
      %v534 = vsel %vm533, %v526, %v530
      %v535 = vand.u32 2147483647, %v468
      %vm536 = vcmp.eq.f32.partialorder %v535, 8.507059e+37
      %v537 = vand.u32 %v468, 2147483648
      %v538 = vor.u32 1.1754944e-38, %v537
      %v539 = vsel %vm536, %v538, %v534
      %v540 = vmul.f32 1.0, %v539
      %v541 = vrcp.pop %v469
      %v542 = vmul.f32 %v469, %v541
      %v543 = vsub.f32 1.0, %v542
      %v544 = vmul.f32 %v541, %v543
      %v545 = vadd.f32 %v541, %v544
      %vm546 = vweird.f32 %v469
      %vm547 = vweird.f32 %v541
      %vm548 = vmor %vm546, %vm547
      %v549 = vsel %vm548, %v541, %v545
      %v550 = vand.u32 2147483647, %v469
      %vm551 = vcmp.eq.f32.partialorder %v550, 8.507059e+37
      %v552 = vand.u32 %v469, 2147483648
      %v553 = vor.u32 1.1754944e-38, %v552
      %v554 = vsel %vm551, %v553, %v549
      %v555 = vmul.f32 1.0, %v554
      %v556 = vrcp.pop %v470
      %v557 = vmul.f32 %v470, %v556
      %v558 = vsub.f32 1.0, %v557
      %v559 = vmul.f32 %v556, %v558
      %v560 = vadd.f32 %v556, %v559
      %vm561 = vweird.f32 %v470
      %vm562 = vweird.f32 %v556
      %vm563 = vmor %vm561, %vm562
      %v564 = vsel %vm563, %v556, %v560
      %v565 = vand.u32 2147483647, %v470
      %vm566 = vcmp.eq.f32.partialorder %v565, 8.507059e+37
      %v567 = vand.u32 %v470, 2147483648
      %v568 = vor.u32 1.1754944e-38, %v567
      %v569 = vsel %vm566, %v568, %v564
      %v570 = vmul.f32 1.0, %v569
      %v571 = vrcp.pop %v471
      %v572 = vmul.f32 %v471, %v571
      %v573 = vsub.f32 1.0, %v572
      %v574 = vmul.f32 %v571, %v573
      %v575 = vadd.f32 %v571, %v574
      %vm576 = vweird.f32 %v471
      %vm577 = vweird.f32 %v571
      %vm578 = vmor %vm576, %vm577
      %v579 = vsel %vm578, %v571, %v575
      %v580 = vand.u32 2147483647, %v471
      %vm581 = vcmp.eq.f32.partialorder %v580, 8.507059e+37
      %v582 = vand.u32 %v471, 2147483648
      %v583 = vor.u32 1.1754944e-38, %v582
      %v584 = vsel %vm581, %v583, %v579
      %v585 = vmul.f32 1.0, %v584
      %v586 = vrcp.pop %v472
      %v587 = vmul.f32 %v472, %v586
      %v588 = vsub.f32 1.0, %v587
      %v589 = vmul.f32 %v586, %v588
      %v590 = vadd.f32 %v586, %v589
      %vm591 = vweird.f32 %v472
      %vm592 = vweird.f32 %v586
      %vm593 = vmor %vm591, %vm592
      %v594 = vsel %vm593, %v586, %v590
      %v595 = vand.u32 2147483647, %v472
      %vm596 = vcmp.eq.f32.partialorder %v595, 8.507059e+37
      %v597 = vand.u32 %v472, 2147483648
      %v598 = vor.u32 1.1754944e-38, %v597
      %v599 = vsel %vm596, %v598, %v594
      %v600 = vmul.f32 1.0, %v599
      %v601 = vrcp.pop %v473
      %v602 = vmul.f32 %v473, %v601
      %v603 = vsub.f32 1.0, %v602
      %v604 = vmul.f32 %v601, %v603
      %v605 = vadd.f32 %v601, %v604
      %vm606 = vweird.f32 %v473
      %vm607 = vweird.f32 %v601
      %vm608 = vmor %vm606, %vm607
      %v609 = vsel %vm608, %v601, %v605
      %v610 = vand.u32 2147483647, %v473
      %vm611 = vcmp.eq.f32.partialorder %v610, 8.507059e+37
      %v612 = vand.u32 %v473, 2147483648
      %v613 = vor.u32 1.1754944e-38, %v612
      %v614 = vsel %vm611, %v613, %v609
      %v615 = vmul.f32 1.0, %v614
      %v616 = vrcp.pop %v474
      %v617 = vmul.f32 %v474, %v616
      %v618 = vsub.f32 1.0, %v617
      %v619 = vmul.f32 %v616, %v618
      %v620 = vadd.f32 %v616, %v619
      %vm621 = vweird.f32 %v474
      %vm622 = vweird.f32 %v616
      %vm623 = vmor %vm621, %vm622
      %v624 = vsel %vm623, %v616, %v620
      %v625 = vand.u32 2147483647, %v474
      %vm626 = vcmp.eq.f32.partialorder %v625, 8.507059e+37
      %v627 = vand.u32 %v474, 2147483648
      %v628 = vor.u32 1.1754944e-38, %v627
      %v629 = vsel %vm626, %v628, %v624
      %v630 = vmul.f32 1.0, %v629
      %v631 = vrcp.pop %v475
      %v632 = vmul.f32 %v475, %v631
      %v633 = vsub.f32 1.0, %v632
      %v634 = vmul.f32 %v631, %v633
      %v635 = vadd.f32 %v631, %v634
      %vm636 = vweird.f32 %v475
      %vm637 = vweird.f32 %v631
      %vm638 = vmor %vm636, %vm637
      %v639 = vsel %vm638, %v631, %v635
      %v640 = vand.u32 2147483647, %v475
      %vm641 = vcmp.eq.f32.partialorder %v640, 8.507059e+37
      %v642 = vand.u32 %v475, 2147483648
      %v643 = vor.u32 1.1754944e-38, %v642
      %v644 = vsel %vm641, %v643, %v639
      %v645 = vmul.f32 1.0, %v644
      %v646 = vrcp.pop %v476
      %v647 = vmul.f32 %v476, %v646
      %v648 = vsub.f32 1.0, %v647
      %v649 = vmul.f32 %v646, %v648
      %v650 = vadd.f32 %v646, %v649
      %vm651 = vweird.f32 %v476
      %vm652 = vweird.f32 %v646
      %vm653 = vmor %vm651, %vm652
      %v654 = vsel %vm653, %v646, %v650
      %v655 = vand.u32 2147483647, %v476
      %vm656 = vcmp.eq.f32.partialorder %v655, 8.507059e+37
      %v657 = vand.u32 %v476, 2147483648
      %v658 = vor.u32 1.1754944e-38, %v657
      %v659 = vsel %vm656, %v658, %v654
      %v660 = vmul.f32 1.0, %v659
      %v661 = vrcp.pop %v477
      %v662 = vmul.f32 %v477, %v661
      %v663 = vsub.f32 1.0, %v662
      %v664 = vmul.f32 %v661, %v663
      %v665 = vadd.f32 %v661, %v664
      %vm666 = vweird.f32 %v477
      %vm667 = vweird.f32 %v661
      %vm668 = vmor %vm666, %vm667
      %v669 = vsel %vm668, %v661, %v665
      %v670 = vand.u32 2147483647, %v477
      %vm671 = vcmp.eq.f32.partialorder %v670, 8.507059e+37
      %v672 = vand.u32 %v477, 2147483648
      %v673 = vor.u32 1.1754944e-38, %v672
      %v674 = vsel %vm671, %v673, %v669
      %v675 = vmul.f32 1.0, %v674
      %v676 = vrcp.pop %v478
      %v677 = vmul.f32 %v478, %v676
      %v678 = vsub.f32 1.0, %v677
      %v679 = vmul.f32 %v676, %v678
      %v680 = vadd.f32 %v676, %v679
      %vm681 = vweird.f32 %v478
      %vm682 = vweird.f32 %v676
      %vm683 = vmor %vm681, %vm682
      %v684 = vsel %vm683, %v676, %v680
      %v685 = vand.u32 2147483647, %v478
      %vm686 = vcmp.eq.f32.partialorder %v685, 8.507059e+37
      %v687 = vand.u32 %v478, 2147483648
      %v688 = vor.u32 1.1754944e-38, %v687
      %v689 = vsel %vm686, %v688, %v684
      %v690 = vmul.f32 1.0, %v689
      %v691 = vrcp.pop %v479
      %v692 = vmul.f32 %v479, %v691
      %v693 = vsub.f32 1.0, %v692
      %v694 = vmul.f32 %v691, %v693
      %v695 = vadd.f32 %v691, %v694
      %vm696 = vweird.f32 %v479
      %vm697 = vweird.f32 %v691
      %vm698 = vmor %vm696, %vm697
      %v699 = vsel %vm698, %v691, %v695
      %v700 = vand.u32 2147483647, %v479
      %vm701 = vcmp.eq.f32.partialorder %v700, 8.507059e+37
      %v702 = vand.u32 %v479, 2147483648
      %v703 = vor.u32 1.1754944e-38, %v702
      %v704 = vsel %vm701, %v703, %v699
      %v705 = vmul.f32 1.0, %v704
      %v706 = vrcp.pop %v480
      %v707 = vmul.f32 %v480, %v706
      %v708 = vsub.f32 1.0, %v707
      %v709 = vmul.f32 %v706, %v708
      %v710 = vadd.f32 %v706, %v709
      %vm711 = vweird.f32 %v480
      %vm712 = vweird.f32 %v706
      %vm713 = vmor %vm711, %vm712
      %v714 = vsel %vm713, %v706, %v710
      %v715 = vand.u32 2147483647, %v480
      %vm716 = vcmp.eq.f32.partialorder %v715, 8.507059e+37
      %v717 = vand.u32 %v480, 2147483648
      %v718 = vor.u32 1.1754944e-38, %v717
      %v719 = vsel %vm716, %v718, %v714
      %v720 = vmul.f32 1.0, %v719
      %v721 = vsub.f32 %v495, %v353
      %v722 = vsub.f32 %v510, %v354
      %v723 = vsub.f32 %v525, %v355
      %v724 = vsub.f32 %v540, %v356
      %v725 = vsub.f32 %v555, %v357
      %v726 = vsub.f32 %v570, %v358
      %v727 = vsub.f32 %v585, %v359
      %v728 = vsub.f32 %v600, %v360
      %v729 = vsub.f32 %v615, %v361
      %v730 = vsub.f32 %v630, %v362
      %v731 = vsub.f32 %v645, %v363
      %v732 = vsub.f32 %v660, %v364
      %v733 = vsub.f32 %v675, %v365
      %v734 = vsub.f32 %v690, %v366
      %v735 = vsub.f32 %v705, %v367
      %v736 = vsub.f32 %v720, %v368
      %v737 = vmul.f32 %v721, %v721
      %v738 = vmul.f32 %v722, %v722
      %v739 = vmul.f32 %v723, %v723
      %v740 = vmul.f32 %v724, %v724
      %v741 = vmul.f32 %v725, %v725
      %v742 = vmul.f32 %v726, %v726
      %v743 = vmul.f32 %v727, %v727
      %v744 = vmul.f32 %v728, %v728
      %v745 = vmul.f32 %v729, %v729
      %v746 = vmul.f32 %v730, %v730
      %v747 = vmul.f32 %v731, %v731
      %v748 = vmul.f32 %v732, %v732
      %v749 = vmul.f32 %v733, %v733
      %v750 = vmul.f32 %v734, %v734
      %v751 = vmul.f32 %v735, %v735
      %v752 = vmul.f32 %v736, %v736
      %v753 = vmul.f32 %v353, 4.0
      %v754 = vmul.f32 %v354, 4.0
      %v755 = vmul.f32 %v355, 4.0
      %v756 = vmul.f32 %v356, 4.0
      %v757 = vmul.f32 %v357, 4.0
      %v758 = vmul.f32 %v358, 4.0
      %v759 = vmul.f32 %v359, 4.0
      %v760 = vmul.f32 %v360, 4.0
      %v761 = vmul.f32 %v361, 4.0
      %v762 = vmul.f32 %v362, 4.0
      %v763 = vmul.f32 %v363, 4.0
      %v764 = vmul.f32 %v364, 4.0
      %v765 = vmul.f32 %v365, 4.0
      %v766 = vmul.f32 %v366, 4.0
      %v767 = vmul.f32 %v367, 4.0
      %v768 = vmul.f32 %v368, 4.0
      %v769 = vadd.f32 %v753, 1.0
      %v770 = vadd.f32 %v754, 1.0
      %v771 = vadd.f32 %v755, 1.0
      %v772 = vadd.f32 %v756, 1.0
      %v773 = vadd.f32 %v757, 1.0
      %v774 = vadd.f32 %v758, 1.0
      %v775 = vadd.f32 %v759, 1.0
      %v776 = vadd.f32 %v760, 1.0
      %v777 = vadd.f32 %v761, 1.0
      %v778 = vadd.f32 %v762, 1.0
      %v779 = vadd.f32 %v763, 1.0
      %v780 = vadd.f32 %v764, 1.0
      %v781 = vadd.f32 %v765, 1.0
      %v782 = vadd.f32 %v766, 1.0
      %v783 = vadd.f32 %v767, 1.0
      %v784 = vadd.f32 %v768, 1.0
      %801 = vrot.lane.b32.xlu0 %v769, 127
      %v802 = vpop.permute.xlu0 %801
      %803 = vrot.lane.b32.xlu0 %v770, 127
      %v804 = vpop.permute.xlu0 %803
      %805 = vrot.lane.b32.xlu0 %v771, 127
      %v806 = vpop.permute.xlu0 %805
      %807 = vrot.lane.b32.xlu0 %v772, 127
      %v808 = vpop.permute.xlu0 %807
      %809 = vrot.lane.b32.xlu0 %v773, 127
      %v810 = vpop.permute.xlu0 %809
      %811 = vrot.lane.b32.xlu0 %v774, 127
      %v812 = vpop.permute.xlu0 %811
      %813 = vrot.lane.b32.xlu0 %v775, 127
      %v814 = vpop.permute.xlu0 %813
      %815 = vrot.lane.b32.xlu0 %v776, 127
      %v816 = vpop.permute.xlu0 %815
      %817 = vrot.lane.b32.xlu0 %v777, 127
      %v818 = vpop.permute.xlu0 %817
      %819 = vrot.lane.b32.xlu0 %v778, 127
      %v820 = vpop.permute.xlu0 %819
      %821 = vrot.lane.b32.xlu0 %v779, 127
      %v822 = vpop.permute.xlu0 %821
      %823 = vrot.lane.b32.xlu0 %v780, 127
      %v824 = vpop.permute.xlu0 %823
      %825 = vrot.lane.b32.xlu0 %v781, 127
      %v826 = vpop.permute.xlu0 %825
      %827 = vrot.lane.b32.xlu0 %v782, 127
      %v828 = vpop.permute.xlu0 %827
      %829 = vrot.lane.b32.xlu0 %v783, 127
      %v830 = vpop.permute.xlu0 %829
      %831 = vrot.lane.b32.xlu0 %v784, 127
      %v832 = vpop.permute.xlu0 %831
      %v849 = vmul.f32 %v737, %v802
      %v850 = vmul.f32 %v738, %v804
      %v851 = vmul.f32 %v739, %v806
      %v852 = vmul.f32 %v740, %v808
      %v853 = vmul.f32 %v741, %v810
      %v854 = vmul.f32 %v742, %v812
      %v855 = vmul.f32 %v743, %v814
      %v856 = vmul.f32 %v744, %v816
      %v857 = vmul.f32 %v745, %v818
      %v858 = vmul.f32 %v746, %v820
      %v859 = vmul.f32 %v747, %v822
      %v860 = vmul.f32 %v748, %v824
      %v861 = vmul.f32 %v749, %v826
      %v862 = vmul.f32 %v750, %v828
      %v863 = vmul.f32 %v751, %v830
      %v864 = vmul.f32 %v752, %v832
      %vm865 = vcmask 64512
      %v866 = vsel %vm865, %v337, -inf
      %867 = vmax.xlane.f32.xlu0 %v866
      %v868 = vpop.xlane.xlu0 %867
      %v869 = vsel %vm865, %v338, -inf
      %870 = vmax.xlane.f32.xlu0 %v869
      %v871 = vpop.xlane.xlu0 %870
      %v872 = vsel %vm865, %v339, -inf
      %873 = vmax.xlane.f32.xlu0 %v872
      %v874 = vpop.xlane.xlu0 %873
      %v875 = vsel %vm865, %v340, -inf
      %876 = vmax.xlane.f32.xlu0 %v875
      %v877 = vpop.xlane.xlu0 %876
      %v878 = vsel %vm865, %v341, -inf
      %879 = vmax.xlane.f32.xlu0 %v878
      %v880 = vpop.xlane.xlu0 %879
      %v881 = vsel %vm865, %v342, -inf
      %882 = vmax.xlane.f32.xlu0 %v881
      %v883 = vpop.xlane.xlu0 %882
      %v884 = vsel %vm865, %v343, -inf
      %885 = vmax.xlane.f32.xlu0 %v884
      %v886 = vpop.xlane.xlu0 %885
      %v887 = vsel %vm865, %v344, -inf
      %888 = vmax.xlane.f32.xlu0 %v887
      %v889 = vpop.xlane.xlu0 %888
      %v890 = vsel %vm865, %v345, -inf
      %891 = vmax.xlane.f32.xlu0 %v890
      %v892 = vpop.xlane.xlu0 %891
      %v893 = vsel %vm865, %v346, -inf
      %894 = vmax.xlane.f32.xlu0 %v893
      %v895 = vpop.xlane.xlu0 %894
      %v896 = vsel %vm865, %v347, -inf
      %897 = vmax.xlane.f32.xlu0 %v896
      %v898 = vpop.xlane.xlu0 %897
      %v899 = vsel %vm865, %v348, -inf
      %900 = vmax.xlane.f32.xlu0 %v899
      %v901 = vpop.xlane.xlu0 %900
      %v902 = vsel %vm865, %v349, -inf
      %903 = vmax.xlane.f32.xlu0 %v902
      %v904 = vpop.xlane.xlu0 %903
      %v905 = vsel %vm865, %v350, -inf
      %906 = vmax.xlane.f32.xlu0 %v905
      %v907 = vpop.xlane.xlu0 %906
      %v908 = vsel %vm865, %v351, -inf
      %909 = vmax.xlane.f32.xlu0 %v908
      %v910 = vpop.xlane.xlu0 %909
      %v911 = vsel %vm865, %v352, -inf
      %912 = vmax.xlane.f32.xlu0 %v911
      %v913 = vpop.xlane.xlu0 %912
      %v914 = vsub.f32 %v337, %v868
      %v915 = vsub.f32 %v338, %v871
      %v916 = vsub.f32 %v339, %v874
      %v917 = vsub.f32 %v340, %v877
      %v918 = vsub.f32 %v341, %v880
      %v919 = vsub.f32 %v342, %v883
      %v920 = vsub.f32 %v343, %v886
      %v921 = vsub.f32 %v344, %v889
      %v922 = vsub.f32 %v345, %v892
      %v923 = vsub.f32 %v346, %v895
      %v924 = vsub.f32 %v347, %v898
      %v925 = vsub.f32 %v348, %v901
      %v926 = vsub.f32 %v349, %v904
      %v927 = vsub.f32 %v350, %v907
      %v928 = vsub.f32 %v351, %v910
      %v929 = vsub.f32 %v352, %v913
      %v930 = vmul.f32 %v914, 1.442695
      %v931 = vpow.pop %v930
      %v932 = vmul.f32 %v915, 1.442695
      %v933 = vpow.pop %v932
      %v934 = vmul.f32 %v916, 1.442695
      %v935 = vpow.pop %v934
      %v936 = vmul.f32 %v917, 1.442695
      %v937 = vpow.pop %v936
      %v938 = vmul.f32 %v918, 1.442695
      %v939 = vpow.pop %v938
      %v940 = vmul.f32 %v919, 1.442695
      %v941 = vpow.pop %v940
      %v942 = vmul.f32 %v920, 1.442695
      %v943 = vpow.pop %v942
      %v944 = vmul.f32 %v921, 1.442695
      %v945 = vpow.pop %v944
      %v946 = vmul.f32 %v922, 1.442695
      %v947 = vpow.pop %v946
      %v948 = vmul.f32 %v923, 1.442695
      %v949 = vpow.pop %v948
      %v950 = vmul.f32 %v924, 1.442695
      %v951 = vpow.pop %v950
      %v952 = vmul.f32 %v925, 1.442695
      %v953 = vpow.pop %v952
      %v954 = vmul.f32 %v926, 1.442695
      %v955 = vpow.pop %v954
      %v956 = vmul.f32 %v927, 1.442695
      %v957 = vpow.pop %v956
      %v958 = vmul.f32 %v928, 1.442695
      %v959 = vpow.pop %v958
      %v960 = vmul.f32 %v929, 1.442695
      %v961 = vpow.pop %v960
      %v962 = vsel %vm865, %v931, 0.0
      %963 = vadd.xlane.f32.xlu0 %v962
      %v964 = vpop.xlane.xlu0 %963
      %v965 = vsel %vm865, %v933, 0.0
      %966 = vadd.xlane.f32.xlu0 %v965
      %v967 = vpop.xlane.xlu0 %966
      %v968 = vsel %vm865, %v935, 0.0
      %969 = vadd.xlane.f32.xlu0 %v968
      %v970 = vpop.xlane.xlu0 %969
      %v971 = vsel %vm865, %v937, 0.0
      %972 = vadd.xlane.f32.xlu0 %v971
      %v973 = vpop.xlane.xlu0 %972
      %v974 = vsel %vm865, %v939, 0.0
      %975 = vadd.xlane.f32.xlu0 %v974
      %v976 = vpop.xlane.xlu0 %975
      %v977 = vsel %vm865, %v941, 0.0
      %978 = vadd.xlane.f32.xlu0 %v977
      %v979 = vpop.xlane.xlu0 %978
      %v980 = vsel %vm865, %v943, 0.0
      %981 = vadd.xlane.f32.xlu0 %v980
      %v982 = vpop.xlane.xlu0 %981
      %v983 = vsel %vm865, %v945, 0.0
      %984 = vadd.xlane.f32.xlu0 %v983
      %v985 = vpop.xlane.xlu0 %984
      %v986 = vsel %vm865, %v947, 0.0
      %987 = vadd.xlane.f32.xlu0 %v986
      %v988 = vpop.xlane.xlu0 %987
      %v989 = vsel %vm865, %v949, 0.0
      %990 = vadd.xlane.f32.xlu0 %v989
      %v991 = vpop.xlane.xlu0 %990
      %v992 = vsel %vm865, %v951, 0.0
      %993 = vadd.xlane.f32.xlu0 %v992
      %v994 = vpop.xlane.xlu0 %993
      %v995 = vsel %vm865, %v953, 0.0
      %996 = vadd.xlane.f32.xlu0 %v995
      %v997 = vpop.xlane.xlu0 %996
      %v998 = vsel %vm865, %v955, 0.0
      %999 = vadd.xlane.f32.xlu0 %v998
      %v1000 = vpop.xlane.xlu0 %999
      %v1001 = vsel %vm865, %v957, 0.0
      %1002 = vadd.xlane.f32.xlu0 %v1001
      %v1003 = vpop.xlane.xlu0 %1002
      %v1004 = vsel %vm865, %v959, 0.0
      %1005 = vadd.xlane.f32.xlu0 %v1004
      %v1006 = vpop.xlane.xlu0 %1005
      %v1007 = vsel %vm865, %v961, 0.0
      %1008 = vadd.xlane.f32.xlu0 %v1007
      %v1009 = vpop.xlane.xlu0 %1008
      %v1010 = vlog2.pop %v964
      %v1011 = vmul.f32 %v1010, 0.6931472
      %v1012 = vlog2.pop %v967
      %v1013 = vmul.f32 %v1012, 0.6931472
      %v1014 = vlog2.pop %v970
      %v1015 = vmul.f32 %v1014, 0.6931472
      %v1016 = vlog2.pop %v973
      %v1017 = vmul.f32 %v1016, 0.6931472
      %v1018 = vlog2.pop %v976
      %v1019 = vmul.f32 %v1018, 0.6931472
      %v1020 = vlog2.pop %v979
      %v1021 = vmul.f32 %v1020, 0.6931472
      %v1022 = vlog2.pop %v982
      %v1023 = vmul.f32 %v1022, 0.6931472
      %v1024 = vlog2.pop %v985
      %v1025 = vmul.f32 %v1024, 0.6931472
      %v1026 = vlog2.pop %v988
      %v1027 = vmul.f32 %v1026, 0.6931472
      %v1028 = vlog2.pop %v991
      %v1029 = vmul.f32 %v1028, 0.6931472
      %v1030 = vlog2.pop %v994
      %v1031 = vmul.f32 %v1030, 0.6931472
      %v1032 = vlog2.pop %v997
      %v1033 = vmul.f32 %v1032, 0.6931472
      %v1034 = vlog2.pop %v1000
      %v1035 = vmul.f32 %v1034, 0.6931472
      %v1036 = vlog2.pop %v1003
      %v1037 = vmul.f32 %v1036, 0.6931472
      %v1038 = vlog2.pop %v1006
      %v1039 = vmul.f32 %v1038, 0.6931472
      %v1040 = vlog2.pop %v1009
      %v1041 = vmul.f32 %v1040, 0.6931472
      %v1042 = vadd.f32 %v868, %v1011
      %v1043 = vadd.f32 %v871, %v1013
      %v1044 = vadd.f32 %v874, %v1015
      %v1045 = vadd.f32 %v877, %v1017
      %v1046 = vadd.f32 %v880, %v1019
      %v1047 = vadd.f32 %v883, %v1021
      %v1048 = vadd.f32 %v886, %v1023
      %v1049 = vadd.f32 %v889, %v1025
      %v1050 = vadd.f32 %v892, %v1027
      %v1051 = vadd.f32 %v895, %v1029
      %v1052 = vadd.f32 %v898, %v1031
      %v1053 = vadd.f32 %v901, %v1033
      %v1054 = vadd.f32 %v904, %v1035
      %v1055 = vadd.f32 %v907, %v1037
      %v1056 = vadd.f32 %v910, %v1039
      %v1057 = vadd.f32 %v913, %v1041
      %v1058 = vlaneseq
      %v1059 = vand.u32 %v1058, 127
      %1060 = vset.pattern.permute.xlu0 2
      %1061 = vperm.xlu0 %1060, %v401
      %v1062 = vpop.permute.xlu0 %1061
      %1063 = vset.pattern.permute.xlu0 2
      %1064 = vperm.xlu0 %1063, %v402
      %v1065 = vpop.permute.xlu0 %1064
      %1066 = vset.pattern.permute.xlu0 2
      %1067 = vperm.xlu0 %1066, %v403
      %v1068 = vpop.permute.xlu0 %1067
      %1069 = vset.pattern.permute.xlu0 2
      %1070 = vperm.xlu0 %1069, %v404
      %v1071 = vpop.permute.xlu0 %1070
      %1072 = vset.pattern.permute.xlu0 2
      %1073 = vperm.xlu0 %1072, %v405
      %v1074 = vpop.permute.xlu0 %1073
      %1075 = vset.pattern.permute.xlu0 2
      %1076 = vperm.xlu0 %1075, %v406
      %v1077 = vpop.permute.xlu0 %1076
      %1078 = vset.pattern.permute.xlu0 2
      %1079 = vperm.xlu0 %1078, %v407
      %v1080 = vpop.permute.xlu0 %1079
      %1081 = vset.pattern.permute.xlu0 2
      %1082 = vperm.xlu0 %1081, %v408
      %v1083 = vpop.permute.xlu0 %1082
      %1084 = vset.pattern.permute.xlu0 2
      %1085 = vperm.xlu0 %1084, %v409
      %v1086 = vpop.permute.xlu0 %1085
      %1087 = vset.pattern.permute.xlu0 2
      %1088 = vperm.xlu0 %1087, %v410
      %v1089 = vpop.permute.xlu0 %1088
      %1090 = vset.pattern.permute.xlu0 2
      %1091 = vperm.xlu0 %1090, %v411
      %v1092 = vpop.permute.xlu0 %1091
      %1093 = vset.pattern.permute.xlu0 2
      %1094 = vperm.xlu0 %1093, %v412
      %v1095 = vpop.permute.xlu0 %1094
      %1096 = vset.pattern.permute.xlu0 2
      %1097 = vperm.xlu0 %1096, %v413
      %v1098 = vpop.permute.xlu0 %1097
      %1099 = vset.pattern.permute.xlu0 2
      %1100 = vperm.xlu0 %1099, %v414
      %v1101 = vpop.permute.xlu0 %1100
      %1102 = vset.pattern.permute.xlu0 2
      %1103 = vperm.xlu0 %1102, %v415
      %v1104 = vpop.permute.xlu0 %1103
      %1105 = vset.pattern.permute.xlu0 2
      %1106 = vperm.xlu0 %1105, %v416
      %v1107 = vpop.permute.xlu0 %1106
      %vm1108 = vcmp.eq.s32.totalorder %v1059, %v1062
      %vm1109 = vcmp.eq.s32.totalorder %v1059, %v1065
      %vm1110 = vcmp.eq.s32.totalorder %v1059, %v1068
      %vm1111 = vcmp.eq.s32.totalorder %v1059, %v1071
      %vm1112 = vcmp.eq.s32.totalorder %v1059, %v1074
      %vm1113 = vcmp.eq.s32.totalorder %v1059, %v1077
      %vm1114 = vcmp.eq.s32.totalorder %v1059, %v1080
      %vm1115 = vcmp.eq.s32.totalorder %v1059, %v1083
      %vm1116 = vcmp.eq.s32.totalorder %v1059, %v1086
      %vm1117 = vcmp.eq.s32.totalorder %v1059, %v1089
      %vm1118 = vcmp.eq.s32.totalorder %v1059, %v1092
      %vm1119 = vcmp.eq.s32.totalorder %v1059, %v1095
      %vm1120 = vcmp.eq.s32.totalorder %v1059, %v1098
      %vm1121 = vcmp.eq.s32.totalorder %v1059, %v1101
      %vm1122 = vcmp.eq.s32.totalorder %v1059, %v1104
      %vm1123 = vcmp.eq.s32.totalorder %v1059, %v1107
      %v1124 = vsel %vm1108, %v337, 0.0
      %v1125 = vsel %vm1109, %v338, 0.0
      %v1126 = vsel %vm1110, %v339, 0.0
      %v1127 = vsel %vm1111, %v340, 0.0
      %v1128 = vsel %vm1112, %v341, 0.0
      %v1129 = vsel %vm1113, %v342, 0.0
      %v1130 = vsel %vm1114, %v343, 0.0
      %v1131 = vsel %vm1115, %v344, 0.0
      %v1132 = vsel %vm1116, %v345, 0.0
      %v1133 = vsel %vm1117, %v346, 0.0
      %v1134 = vsel %vm1118, %v347, 0.0
      %v1135 = vsel %vm1119, %v348, 0.0
      %v1136 = vsel %vm1120, %v349, 0.0
      %v1137 = vsel %vm1121, %v350, 0.0
      %v1138 = vsel %vm1122, %v351, 0.0
      %v1139 = vsel %vm1123, %v352, 0.0
      %v1140 = vsel %vm865, %v1124, 0.0
      %1141 = vadd.xlane.f32.xlu0 %v1140
      %v1142 = vpop.xlane.xlu0 %1141
      %v1143 = vsel %vm865, %v1125, 0.0
      %1144 = vadd.xlane.f32.xlu0 %v1143
      %v1145 = vpop.xlane.xlu0 %1144
      %v1146 = vsel %vm865, %v1126, 0.0
      %1147 = vadd.xlane.f32.xlu0 %v1146
      %v1148 = vpop.xlane.xlu0 %1147
      %v1149 = vsel %vm865, %v1127, 0.0
      %1150 = vadd.xlane.f32.xlu0 %v1149
      %v1151 = vpop.xlane.xlu0 %1150
      %v1152 = vsel %vm865, %v1128, 0.0
      %1153 = vadd.xlane.f32.xlu0 %v1152
      %v1154 = vpop.xlane.xlu0 %1153
      %v1155 = vsel %vm865, %v1129, 0.0
      %1156 = vadd.xlane.f32.xlu0 %v1155
      %v1157 = vpop.xlane.xlu0 %1156
      %v1158 = vsel %vm865, %v1130, 0.0
      %1159 = vadd.xlane.f32.xlu0 %v1158
      %v1160 = vpop.xlane.xlu0 %1159
      %v1161 = vsel %vm865, %v1131, 0.0
      %1162 = vadd.xlane.f32.xlu0 %v1161
      %v1163 = vpop.xlane.xlu0 %1162
      %v1164 = vsel %vm865, %v1132, 0.0
      %1165 = vadd.xlane.f32.xlu0 %v1164
      %v1166 = vpop.xlane.xlu0 %1165
      %v1167 = vsel %vm865, %v1133, 0.0
      %1168 = vadd.xlane.f32.xlu0 %v1167
      %v1169 = vpop.xlane.xlu0 %1168
      %v1170 = vsel %vm865, %v1134, 0.0
      %1171 = vadd.xlane.f32.xlu0 %v1170
      %v1172 = vpop.xlane.xlu0 %1171
      %v1173 = vsel %vm865, %v1135, 0.0
      %1174 = vadd.xlane.f32.xlu0 %v1173
      %v1175 = vpop.xlane.xlu0 %1174
      %v1176 = vsel %vm865, %v1136, 0.0
      %1177 = vadd.xlane.f32.xlu0 %v1176
      %v1178 = vpop.xlane.xlu0 %1177
      %v1179 = vsel %vm865, %v1137, 0.0
      %1180 = vadd.xlane.f32.xlu0 %v1179
      %v1181 = vpop.xlane.xlu0 %1180
      %v1182 = vsel %vm865, %v1138, 0.0
      %1183 = vadd.xlane.f32.xlu0 %v1182
      %v1184 = vpop.xlane.xlu0 %1183
      %v1185 = vsel %vm865, %v1139, 0.0
      %1186 = vadd.xlane.f32.xlu0 %v1185
      %v1187 = vpop.xlane.xlu0 %1186
      %v1188 = vsub.f32 %v1042, %v1142
      %v1189 = vsub.f32 %v1043, %v1145
      %v1190 = vsub.f32 %v1044, %v1148
      %v1191 = vsub.f32 %v1045, %v1151
      %v1192 = vsub.f32 %v1046, %v1154
      %v1193 = vsub.f32 %v1047, %v1157
      %v1194 = vsub.f32 %v1048, %v1160
      %v1195 = vsub.f32 %v1049, %v1163
      %v1196 = vsub.f32 %v1050, %v1166
      %v1197 = vsub.f32 %v1051, %v1169
      %v1198 = vsub.f32 %v1052, %v1172
      %v1199 = vsub.f32 %v1053, %v1175
      %v1200 = vsub.f32 %v1054, %v1178
      %v1201 = vsub.f32 %v1055, %v1181
      %v1202 = vsub.f32 %v1056, %v1184
      %v1203 = vsub.f32 %v1057, %v1187
      %v1204 = vmul.f32 %v1188, %v353
      %v1205 = vmul.f32 %v1189, %v354
      %v1206 = vmul.f32 %v1190, %v355
      %v1207 = vmul.f32 %v1191, %v356
      %v1208 = vmul.f32 %v1192, %v357
      %v1209 = vmul.f32 %v1193, %v358
      %v1210 = vmul.f32 %v1194, %v359
      %v1211 = vmul.f32 %v1195, %v360
      %v1212 = vmul.f32 %v1196, %v361
      %v1213 = vmul.f32 %v1197, %v362
      %v1214 = vmul.f32 %v1198, %v363
      %v1215 = vmul.f32 %v1199, %v364
      %v1216 = vmul.f32 %v1200, %v365
      %v1217 = vmul.f32 %v1201, %v366
      %v1218 = vmul.f32 %v1202, %v367
      %v1219 = vmul.f32 %v1203, %v368
      %v1220 = vsub.f32 1.0, %v385
      %v1221 = vsub.f32 1.0, %v386
      %v1222 = vsub.f32 1.0, %v387
      %v1223 = vsub.f32 1.0, %v388
      %v1224 = vsub.f32 1.0, %v389
      %v1225 = vsub.f32 1.0, %v390
      %v1226 = vsub.f32 1.0, %v391
      %v1227 = vsub.f32 1.0, %v392
      %v1228 = vsub.f32 1.0, %v393
      %v1229 = vsub.f32 1.0, %v394
      %v1230 = vsub.f32 1.0, %v395
      %v1231 = vsub.f32 1.0, %v396
      %v1232 = vsub.f32 1.0, %v397
      %v1233 = vsub.f32 1.0, %v398
      %v1234 = vsub.f32 1.0, %v399
      %v1235 = vsub.f32 1.0, %v400
      %1252 = vrot.lane.b32.xlu0 %v353, 121
      %v1253 = vpop.permute.xlu0 %1252
      %1254 = vrot.lane.b32.xlu0 %v354, 121
      %v1255 = vpop.permute.xlu0 %1254
      %1256 = vrot.lane.b32.xlu0 %v355, 121
      %v1257 = vpop.permute.xlu0 %1256
      %1258 = vrot.lane.b32.xlu0 %v356, 121
      %v1259 = vpop.permute.xlu0 %1258
      %1260 = vrot.lane.b32.xlu0 %v357, 121
      %v1261 = vpop.permute.xlu0 %1260
      %1262 = vrot.lane.b32.xlu0 %v358, 121
      %v1263 = vpop.permute.xlu0 %1262
      %1264 = vrot.lane.b32.xlu0 %v359, 121
      %v1265 = vpop.permute.xlu0 %1264
      %1266 = vrot.lane.b32.xlu0 %v360, 121
      %v1267 = vpop.permute.xlu0 %1266
      %1268 = vrot.lane.b32.xlu0 %v361, 121
      %v1269 = vpop.permute.xlu0 %1268
      %1270 = vrot.lane.b32.xlu0 %v362, 121
      %v1271 = vpop.permute.xlu0 %1270
      %1272 = vrot.lane.b32.xlu0 %v363, 121
      %v1273 = vpop.permute.xlu0 %1272
      %1274 = vrot.lane.b32.xlu0 %v364, 121
      %v1275 = vpop.permute.xlu0 %1274
      %1276 = vrot.lane.b32.xlu0 %v365, 121
      %v1277 = vpop.permute.xlu0 %1276
      %1278 = vrot.lane.b32.xlu0 %v366, 121
      %v1279 = vpop.permute.xlu0 %1278
      %1280 = vrot.lane.b32.xlu0 %v367, 121
      %v1281 = vpop.permute.xlu0 %1280
      %1282 = vrot.lane.b32.xlu0 %v368, 121
      %v1283 = vpop.permute.xlu0 %1282
      %v1300 = vmul.f32 %v1220, %v1253
      %v1301 = vmul.f32 %v1221, %v1255
      %v1302 = vmul.f32 %v1222, %v1257
      %v1303 = vmul.f32 %v1223, %v1259
      %v1304 = vmul.f32 %v1224, %v1261
      %v1305 = vmul.f32 %v1225, %v1263
      %v1306 = vmul.f32 %v1226, %v1265
      %v1307 = vmul.f32 %v1227, %v1267
      %v1308 = vmul.f32 %v1228, %v1269
      %v1309 = vmul.f32 %v1229, %v1271
      %v1310 = vmul.f32 %v1230, %v1273
      %v1311 = vmul.f32 %v1231, %v1275
      %v1312 = vmul.f32 %v1232, %v1277
      %v1313 = vmul.f32 %v1233, %v1279
      %v1314 = vmul.f32 %v1234, %v1281
      %v1315 = vmul.f32 %v1235, %v1283
      %1316 = vrot.lane.b32.xlu0 %v353, 127
      %v1317 = vpop.permute.xlu0 %1316
      %1318 = vrot.lane.b32.xlu0 %v354, 127
      %v1319 = vpop.permute.xlu0 %1318
      %1320 = vrot.lane.b32.xlu0 %v355, 127
      %v1321 = vpop.permute.xlu0 %1320
      %1322 = vrot.lane.b32.xlu0 %v356, 127
      %v1323 = vpop.permute.xlu0 %1322
      %1324 = vrot.lane.b32.xlu0 %v357, 127
      %v1325 = vpop.permute.xlu0 %1324
      %1326 = vrot.lane.b32.xlu0 %v358, 127
      %v1327 = vpop.permute.xlu0 %1326
      %1328 = vrot.lane.b32.xlu0 %v359, 127
      %v1329 = vpop.permute.xlu0 %1328
      %1330 = vrot.lane.b32.xlu0 %v360, 127
      %v1331 = vpop.permute.xlu0 %1330
      %1332 = vrot.lane.b32.xlu0 %v361, 127
      %v1333 = vpop.permute.xlu0 %1332
      %1334 = vrot.lane.b32.xlu0 %v362, 127
      %v1335 = vpop.permute.xlu0 %1334
      %1336 = vrot.lane.b32.xlu0 %v363, 127
      %v1337 = vpop.permute.xlu0 %1336
      %1338 = vrot.lane.b32.xlu0 %v364, 127
      %v1339 = vpop.permute.xlu0 %1338
      %1340 = vrot.lane.b32.xlu0 %v365, 127
      %v1341 = vpop.permute.xlu0 %1340
      %1342 = vrot.lane.b32.xlu0 %v366, 127
      %v1343 = vpop.permute.xlu0 %1342
      %1344 = vrot.lane.b32.xlu0 %v367, 127
      %v1345 = vpop.permute.xlu0 %1344
      %1346 = vrot.lane.b32.xlu0 %v368, 127
      %v1347 = vpop.permute.xlu0 %1346
      %v1364 = vmul.f32 %v1300, %v1317
      %v1365 = vmul.f32 %v1301, %v1319
      %v1366 = vmul.f32 %v1302, %v1321
      %v1367 = vmul.f32 %v1303, %v1323
      %v1368 = vmul.f32 %v1304, %v1325
      %v1369 = vmul.f32 %v1305, %v1327
      %v1370 = vmul.f32 %v1306, %v1329
      %v1371 = vmul.f32 %v1307, %v1331
      %v1372 = vmul.f32 %v1308, %v1333
      %v1373 = vmul.f32 %v1309, %v1335
      %v1374 = vmul.f32 %v1310, %v1337
      %v1375 = vmul.f32 %v1311, %v1339
      %v1376 = vmul.f32 %v1312, %v1341
      %v1377 = vmul.f32 %v1313, %v1343
      %v1378 = vmul.f32 %v1314, %v1345
      %v1379 = vmul.f32 %v1315, %v1347
      %vm1380 = vcmask 7168
      %v1381 = vsel %vm1380, %v849, 0.0
      %v1382 = vsel %vm1380, %v850, 0.0
      %v1383 = vadd.f32 %v1381, %v1382
      %v1384 = vsel %vm1380, %v851, 0.0
      %v1385 = vadd.f32 %v1383, %v1384
      %v1386 = vsel %vm1380, %v852, 0.0
      %v1387 = vadd.f32 %v1385, %v1386
      %v1388 = vsel %vm1380, %v853, 0.0
      %v1389 = vadd.f32 %v1387, %v1388
      %v1390 = vsel %vm1380, %v854, 0.0
      %v1391 = vadd.f32 %v1389, %v1390
      %v1392 = vsel %vm1380, %v855, 0.0
      %v1393 = vadd.f32 %v1391, %v1392
      %v1394 = vsel %vm1380, %v856, 0.0
      %v1395 = vadd.f32 %v1393, %v1394
      %v1396 = vsel %vm1380, %v857, 0.0
      %v1397 = vadd.f32 %v1395, %v1396
      %v1398 = vsel %vm1380, %v858, 0.0
      %v1399 = vadd.f32 %v1397, %v1398
      %v1400 = vsel %vm1380, %v859, 0.0
      %v1401 = vadd.f32 %v1399, %v1400
      %v1402 = vsel %vm1380, %v860, 0.0
      %v1403 = vadd.f32 %v1401, %v1402
      %v1404 = vsel %vm1380, %v861, 0.0
      %v1405 = vadd.f32 %v1403, %v1404
      %v1406 = vsel %vm1380, %v862, 0.0
      %v1407 = vadd.f32 %v1405, %v1406
      %v1408 = vsel %vm1380, %v863, 0.0
      %v1409 = vadd.f32 %v1407, %v1408
      %v1410 = vsel %vm1380, %v864, 0.0
      %v1411 = vadd.f32 %v1409, %v1410
      %1412 = vadd.xlane.f32.xlu0 %v1411
      %v1413 = vpop.xlane.xlu0 %1412
      %v1414 = vrot.slane %v1413, 4
      %v1415 = vadd.f32 %v1413, %v1414
      %v1416 = vrot.slane %v1415, 2
      %v1417 = vadd.f32 %v1415, %v1416
      %v1418 = vrot.slane %v1417, 1
      %v1419 = vadd.f32 %v1417, %v1418
      %s1420 = vtos %v1419
      %1437 = vrot.lane.b32.xlu0 %v1204, 127
      %v1438 = vpop.permute.xlu0 %1437
      %1439 = vrot.lane.b32.xlu0 %v1205, 127
      %v1440 = vpop.permute.xlu0 %1439
      %1441 = vrot.lane.b32.xlu0 %v1206, 127
      %v1442 = vpop.permute.xlu0 %1441
      %1443 = vrot.lane.b32.xlu0 %v1207, 127
      %v1444 = vpop.permute.xlu0 %1443
      %1445 = vrot.lane.b32.xlu0 %v1208, 127
      %v1446 = vpop.permute.xlu0 %1445
      %1447 = vrot.lane.b32.xlu0 %v1209, 127
      %v1448 = vpop.permute.xlu0 %1447
      %1449 = vrot.lane.b32.xlu0 %v1210, 127
      %v1450 = vpop.permute.xlu0 %1449
      %1451 = vrot.lane.b32.xlu0 %v1211, 127
      %v1452 = vpop.permute.xlu0 %1451
      %1453 = vrot.lane.b32.xlu0 %v1212, 127
      %v1454 = vpop.permute.xlu0 %1453
      %1455 = vrot.lane.b32.xlu0 %v1213, 127
      %v1456 = vpop.permute.xlu0 %1455
      %1457 = vrot.lane.b32.xlu0 %v1214, 127
      %v1458 = vpop.permute.xlu0 %1457
      %1459 = vrot.lane.b32.xlu0 %v1215, 127
      %v1460 = vpop.permute.xlu0 %1459
      %1461 = vrot.lane.b32.xlu0 %v1216, 127
      %v1462 = vpop.permute.xlu0 %1461
      %1463 = vrot.lane.b32.xlu0 %v1217, 127
      %v1464 = vpop.permute.xlu0 %1463
      %1465 = vrot.lane.b32.xlu0 %v1218, 127
      %v1466 = vpop.permute.xlu0 %1465
      %1467 = vrot.lane.b32.xlu0 %v1219, 127
      %v1468 = vpop.permute.xlu0 %1467
      %v1485 = vsel %vm1380, %v1438, 0.0
      %v1486 = vsel %vm1380, %v1440, 0.0
      %v1487 = vadd.f32 %v1485, %v1486
      %v1488 = vsel %vm1380, %v1442, 0.0
      %v1489 = vadd.f32 %v1487, %v1488
      %v1490 = vsel %vm1380, %v1444, 0.0
      %v1491 = vadd.f32 %v1489, %v1490
      %v1492 = vsel %vm1380, %v1446, 0.0
      %v1493 = vadd.f32 %v1491, %v1492
      %v1494 = vsel %vm1380, %v1448, 0.0
      %v1495 = vadd.f32 %v1493, %v1494
      %v1496 = vsel %vm1380, %v1450, 0.0
      %v1497 = vadd.f32 %v1495, %v1496
      %v1498 = vsel %vm1380, %v1452, 0.0
      %v1499 = vadd.f32 %v1497, %v1498
      %v1500 = vsel %vm1380, %v1454, 0.0
      %v1501 = vadd.f32 %v1499, %v1500
      %v1502 = vsel %vm1380, %v1456, 0.0
      %v1503 = vadd.f32 %v1501, %v1502
      %v1504 = vsel %vm1380, %v1458, 0.0
      %v1505 = vadd.f32 %v1503, %v1504
      %v1506 = vsel %vm1380, %v1460, 0.0
      %v1507 = vadd.f32 %v1505, %v1506
      %v1508 = vsel %vm1380, %v1462, 0.0
      %v1509 = vadd.f32 %v1507, %v1508
      %v1510 = vsel %vm1380, %v1464, 0.0
      %v1511 = vadd.f32 %v1509, %v1510
      %v1512 = vsel %vm1380, %v1466, 0.0
      %v1513 = vadd.f32 %v1511, %v1512
      %v1514 = vsel %vm1380, %v1468, 0.0
      %v1515 = vadd.f32 %v1513, %v1514
      %1516 = vadd.xlane.f32.xlu0 %v1515
      %v1517 = vpop.xlane.xlu0 %1516
      %v1518 = vrot.slane %v1517, 4
      %v1519 = vadd.f32 %v1517, %v1518
      %v1520 = vrot.slane %v1519, 2
      %v1521 = vadd.f32 %v1519, %v1520
      %v1522 = vrot.slane %v1521, 1
      %v1523 = vadd.f32 %v1521, %v1522
      %s1524 = vtos %v1523
      %v1525 = vsel %vm1380, %v1364, 0.0
      %v1526 = vsel %vm1380, %v1365, 0.0
      %v1527 = vadd.f32 %v1525, %v1526
      %v1528 = vsel %vm1380, %v1366, 0.0
      %v1529 = vadd.f32 %v1527, %v1528
      %v1530 = vsel %vm1380, %v1367, 0.0
      %v1531 = vadd.f32 %v1529, %v1530
      %v1532 = vsel %vm1380, %v1368, 0.0
      %v1533 = vadd.f32 %v1531, %v1532
      %v1534 = vsel %vm1380, %v1369, 0.0
      %v1535 = vadd.f32 %v1533, %v1534
      %v1536 = vsel %vm1380, %v1370, 0.0
      %v1537 = vadd.f32 %v1535, %v1536
      %v1538 = vsel %vm1380, %v1371, 0.0
      %v1539 = vadd.f32 %v1537, %v1538
      %v1540 = vsel %vm1380, %v1372, 0.0
      %v1541 = vadd.f32 %v1539, %v1540
      %v1542 = vsel %vm1380, %v1373, 0.0
      %v1543 = vadd.f32 %v1541, %v1542
      %v1544 = vsel %vm1380, %v1374, 0.0
      %v1545 = vadd.f32 %v1543, %v1544
      %v1546 = vsel %vm1380, %v1375, 0.0
      %v1547 = vadd.f32 %v1545, %v1546
      %v1548 = vsel %vm1380, %v1376, 0.0
      %v1549 = vadd.f32 %v1547, %v1548
      %v1550 = vsel %vm1380, %v1377, 0.0
      %v1551 = vadd.f32 %v1549, %v1550
      %v1552 = vsel %vm1380, %v1378, 0.0
      %v1553 = vadd.f32 %v1551, %v1552
      %v1554 = vsel %vm1380, %v1379, 0.0
      %v1555 = vadd.f32 %v1553, %v1554
      %1556 = vadd.xlane.f32.xlu0 %v1555
      %v1557 = vpop.xlane.xlu0 %1556
      %v1558 = vrot.slane %v1557, 4
      %v1559 = vadd.f32 %v1557, %v1558
      %v1560 = vrot.slane %v1559, 2
      %v1561 = vadd.f32 %v1559, %v1560
      %v1562 = vrot.slane %v1561, 1
      %v1563 = vadd.f32 %v1561, %v1562
      %s1564 = vtos %v1563
      %vm1565 = vcmp.eq.s32.totalorder %v1059, 0
      %vm1566 = vcmp.eq.s32.totalorder %v1059, 1
      %vm1567 = vcmp.eq.s32.totalorder %v1059, 2
      %v1568 = vstv %s1564
      %v1569 = vsel %vm1567, %v1568, 0.0
      %v1570 = vstv %s1524
      %v1571 = vsel %vm1566, %v1570, %v1569
      %v1572 = vstv %s1420
      %v1573 = vsel %vm1565, %v1572, %v1571
      %v1574 = vld [vmem:[#allocation2] sm:$0xff]
      %v1575 = vadd.f32 %v1574, %v1573
      %1576 = vst [vmem:[#allocation2] sm:$0xff] %v1575
      %p1577 = scmp.eq.s32.totalorder %s20, 1
      // Predicated region
      $region41: #{criterion_forward.1} parent=35 // pred_check
        %p1578 = pneg %p1577
      $region42: #{criterion_forward.1} parent=35 // pred_check_branch
        %1580 = sbr.rel (%p1578) target = $region44
      $region43: #{criterion_forward.1} parent=35 // pred_region
        %v1581 = vld [vmem:[#allocation2] sm:$0xff]
        %1582 = vst [vmem:[%s331] sm:$0xff] %v1581
      $region44: #{criterion_forward.1} parent=35 // pred_fallthru
        _
      %p1583 = scmp.lt.s32.totalorder %s19, 1
      %s1584 = scalar_select %p1583, %s19, 1
      %s1585 = smul.addr %s1584, 8
      %s1586 = scalar_lea.vmem %s4, %s1585
      // Predicated region
      $region45: #{criterion_forward.1} parent=35 // pred_check
        %p1587 = pneg %p165
      $region46: #{criterion_forward.1} parent=35 // pred_check_branch
        %1589 = sbr.rel (%p1587) target = $region48
      $region47: #{criterion_forward.1} parent=35 // pred_region
        _
      $region48: #{criterion_forward.1} parent=35 // pred_fallthru
        _
    $region36: #{criterion_forward.1} parent=5 // pred_fallthru
      _
    %p1590 = scmp.le.s32.totalorder 2, %s10
    // Predicated region
    $region49: #{criterion_forward.1} parent=5 // pred_check
      %p1591 = pneg %p1590
    $region50: #{criterion_forward.1} parent=5 // pred_check_branch
      %1593 = sbr.rel (%p1591) target = $region52
    $region51: #{criterion_forward.1} parent=5 // pred_region
      %s1594 = ssub.s32 %s10, 2
      // Predicated region
      $region53: #{criterion_forward.1} parent=51 // pred_check
        %p1595 = pneg %p171
      $region54: #{criterion_forward.1} parent=51 // pred_check_branch
        %1597 = sbr.rel (%p1595) target = $region56
      $region55: #{criterion_forward.1} parent=51 // pred_region
        %p1598 = scmp.lt.s32.totalorder %s21, 1
        %s1599 = scalar_select %p1598, %s21, 1
        %s1600 = smul.addr %s1599, 8
        %s1601 = scalar_lea.vmem %s4, %s1600
      $region56: #{criterion_forward.1} parent=51 // pred_fallthru
        _
    $region52: #{criterion_forward.1} parent=5 // pred_fallthru
      _
  $region6: #{criterion_forward.1} parent=0 // loop_footer
    %s14 = sadd.s32 1, %s10
  $region7: #{criterion_forward.1} parent=0 // loop_footer_branch
    %9 = sbr.rel target = $region3
  $region8: #{criterion_forward.1} parent=0 // loop_exit
    _

</llo_original>
